<compile_context>
chip_gen: v7x
topology: tpu7x:2x2x1
jax: 0.10.0
libtpu: 0.0.40
codegen_flags: <defaults>
</compile_context>

<pallas_src>
import functools
import math

import numpy as np

import jax
import jax.numpy as jnp
from jax.experimental import pallas as pl
from jax.experimental.pallas import tpu as pltpu


# ---------- schedule construction (mirrors Reroll.__init__) -------------------

def build_reroll_schedule(input_size, patch_stride, unroll_schedule, stage_ends, q_pool):
    size = (input_size[0] // patch_stride[0], input_size[1] // patch_stride[1])
    schedule = {}
    us = [tuple(s) for s in unroll_schedule]
    for i in range(stage_ends[-1] + 1):
        schedule[i] = (list(us), tuple(size))
        if i in stage_ends[:q_pool]:
            if len(us) > 0:
                size = (size[0] // us[0][0], size[1] // us[0][1])
            us = us[1:]
    return schedule


# ---------- pure-JAX reference (exact transcription of the torch forward) -----

def reroll_reference(x, schedule, size):
    """x: [B, N, C] -> [B, H, W, C] (mask=None path)."""
    B, N, C = x.shape
    D = len(size)
    cur_mu_shape = [1] * D
    for strides in schedule:
        x = x.reshape(B, *strides, N // math.prod(strides), *cur_mu_shape, C)
        L = x.ndim
        permute = ([0, 1 + D]
                   + sum([list(p) for p in zip(range(1, 1 + D), range(1 + D + 1, L - 1))], [])
                   + [L - 1])
        x = jnp.transpose(x, permute)
        for i in range(D):
            cur_mu_shape[i] *= strides[i]
        x = x.reshape(B, -1, *cur_mu_shape, C)
        N = x.shape[1]
    x = x.reshape(B, N, *cur_mu_shape, C)
    # undo_windowing
    num_mu = [s // mu for s, mu in zip(size, cur_mu_shape)]
    x = x.reshape(B, *num_mu, *cur_mu_shape, C)
    permute = ([0]
               + sum([list(p) for p in zip(range(1, 1 + D), range(1 + D, 1 + 2 * D))], [])
               + [x.ndim - 1])
    x = jnp.transpose(x, permute).reshape(B, *size, C)
    return x


# ---------- host-side (numpy) permutation tables, cached -----------------------

def _reroll_perm_np(schedule, size):
    """perm2d[h, w] = source token index feeding output spatial position (h, w)."""
    H, W = size
    N = H * W
    D = len(size)
    x = np.arange(N, dtype=np.int64).reshape(1, N, 1)   # [B=1, N, C=1]
    B, C = 1, 1
    cur_mu = [1] * D
    n = N
    for strides in schedule:
        x = x.reshape(B, *strides, n // math.prod(strides), *cur_mu, C)
        L = x.ndim
        permute = ([0, 1 + D]
                   + sum([list(p) for p in zip(range(1, 1 + D), range(1 + D + 1, L - 1))], [])
                   + [L - 1])
        x = np.transpose(x, permute)
        for i in range(D):
            cur_mu[i] *= strides[i]
        x = x.reshape(B, -1, *cur_mu, C)
        n = x.shape[1]
    x = x.reshape(B, n, *cur_mu, C)
    # undo_windowing
    num_mu = [s // mu for s, mu in zip(size, cur_mu)]
    x = x.reshape(B, *num_mu, *cur_mu, C)
    permute = ([0]
               + sum([list(p) for p in zip(range(1, 1 + D), range(1 + D, 1 + 2 * D))], [])
               + [x.ndim - 1])
    x = np.transpose(x, permute).reshape(B, *size, C)
    return x.reshape(H, W)


def _coloff_runs(coloff):
    """Maximal contiguous runs: (dst_w_start, src_offset, run_len) triples."""
    runs = []
    W = len(coloff)
    w = 0
    while w < W:
        w0 = w
        src0 = coloff[w]
        while w + 1 < W and coloff[w + 1] == coloff[w] + 1:
            w += 1
        runs.append((w0, src0, w - w0 + 1))
        w += 1
    return tuple(runs)


@functools.lru_cache(maxsize=None)
def _reroll_tables(schedule_key, size):
    """Host-precomputed, cached separable permutation tables.

    Returns (rowbase[H] int32 numpy array, coloff tuple, runs tuple, identity bool)
    with perm2d[h, w] == rowbase[h] + coloff[w].
    """
    schedule = [tuple(s) for s in schedule_key]
    H, W = size
    perm2d = _reroll_perm_np(schedule, size)
    coloff = perm2d[0, :] - perm2d[0, 0]
    rowbase = perm2d[:, 0] - int(coloff[0])
    if not np.array_equal(perm2d, rowbase[:, None] + coloff[None, :]):
        # Mathematically this cannot trigger for Reroll schedules, but guard it.
        raise ValueError("Reroll permutation is not row/column separable")
    coloff = tuple(int(c) for c in coloff)
    runs = _coloff_runs(coloff)
    identity = bool(np.array_equal(perm2d, np.arange(H * W, dtype=np.int64).reshape(H, W)))
    return rowbase.astype(np.int32), coloff, runs, identity


# ---------- Pallas kernel ------------------------------------------------------

def _make_reroll_kernel(tile_rows, runs):
    """Build a kernel assembling `tile_rows` output rows per grid step.

    runs: static (dst_w_start, src_offset, run_len, align) tuples baked in;
    rowbase is scalar-prefetched (SMEM).
    """
    def kernel(rowbase_ref, x_ref, o_ref):
        # rowbase_ref: SMEM (H_pad,) int32   (scalar-prefetched row base indices)
        # x_ref:       VMEM (1, N, C)        whole token slab of this batch element
        # o_ref:       VMEM (1, tile_rows, W, C) output rows [h0, h0 + tile_rows)
        h0 = pl.program_id(1) * tile_rows
        for t in range(tile_rows):                      # static unroll over rows
            base = rowbase_ref[h0 + t]
            for (w0, src0, run, align) in runs:         # static unroll over runs
                start = base + src0
                if align >= 8 and align % 8 == 0:
                    start = pl.multiple_of(start, 8)
                # (run, C) sublane-dense copy per run (degenerates to (1, C)
                # for fully shuffled schedules).
                o_ref[0, t, pl.ds(w0, run), :] = x_ref[0, pl.ds(start, run), :]

    return kernel


def reroll_pallas(x, schedule, size, tile_rows=None):
    """Reroll x:[B, N, C] -> [B, H, W, C] (mask=None path) with a Pallas kernel."""
    B, N, C = x.shape
    H, W = size
    assert H * W == N, "masked Reroll path not supported here"

    schedule_key = tuple(tuple(int(v) for v in s) for s in schedule)
    rowbase_np, coloff, runs, identity = _reroll_tables(schedule_key, (int(H), int(W)))

    # Identity fast path: all blocks past q_pool reroll to spatial order with
    # a pure reshape -- skip the kernel (and its 2x HBM round trip) entirely.
    if identity:
        return x.reshape(B, H, W, C)

    # Rows assembled per grid step. Bounded by an unrolled-copy budget so code
    # size stays sane even for fully shuffled schedules (runs of length 1).
    n_runs = len(runs)
    if tile_rows is None:
        tile_rows = max(1, min(H, 32, max(1, 256 // n_runs)))
    tile_rows = int(max(1, min(int(tile_rows), H)))
    n_row_tiles = (H + tile_rows - 1) // tile_rows       # cdiv: tail block clipped
    H_pad = n_row_tiles * tile_rows

    # Pad rowbase with 0 (a valid token index) so SMEM reads and the x_ref
    # gathers stay in-bounds for tail rows; the tail output rows are dropped by
    # the (clipped) writeback DMA of the final partial block.
    rowbase_padded = np.zeros((H_pad,), dtype=np.int32)
    rowbase_padded[:H] = rowbase_np

    # Per-run alignment analysis for pl.multiple_of hints (f32 sublane = 8 rows).
    runs_with_align = []
    starts_all = rowbase_padded.astype(np.int64)
    for (w0, src0, run) in runs:
        g = int(np.gcd.reduce(starts_all + int(src0)))
        runs_with_align.append((int(w0), int(src0), int(run), g))
    runs_with_align = tuple(runs_with_align)

    rowbase = jnp.asarray(rowbase_padded)                # (H_pad,) int32 SMEM table

    itemsize = int(np.dtype(x.dtype).itemsize)
    in_block_bytes = N * C * itemsize                    # resident [N, C] slab
    out_block_bytes = tile_rows * W * C * itemsize
    vmem_needed = 2 * (in_block_bytes + out_block_bytes) + (1 << 20)
    vmem_limit = int(min(128 * 1024 * 1024, max(32 * 1024 * 1024, vmem_needed)))

    kernel = _make_reroll_kernel(tile_rows, runs_with_align)
    return pl.pallas_call(
        kernel,
        out_shape=jax.ShapeDtypeStruct((B, H, W, C), x.dtype),
        grid_spec=pltpu.PrefetchScalarGridSpec(
            num_scalar_prefetch=1,
            grid=(B, n_row_tiles),
            in_specs=[
                # Whole [N, C] slab of batch b; block index is constant along
                # the row grid axis => fetched from HBM only once per batch
                # per core.
                pl.BlockSpec((1, N, C), lambda b, r, rowbase_ref: (b, 0, 0)),
            ],
            out_specs=pl.BlockSpec(
                (1, tile_rows, W, C), lambda b, r, rowbase_ref: (b, r, 0, 0)),
        ),
        compiler_params=pltpu.CompilerParams(
            # Output blocks are disjoint and the input is read-only, so both
            # axes are semantically parallel (lets v7x use both TCs at B == 1).
            dimension_semantics=("parallel", "parallel"),
            vmem_limit_bytes=vmem_limit),
        cost_estimate=pl.CostEstimate(
            flops=0, transcendentals=0,
            bytes_accessed=2 * B * N * C * itemsize),
    )(rowbase, x)


# ---------- self test ----------------------------------------------------------

if __name__ == "__main__":
    # Small Hiera-like config. Reroll has no learnable parameters.
    input_size = (16, 16)
    patch_stride = (2, 2)
    unroll_schedule = [(2, 2), (2, 2)]
    stage_ends = [1, 3, 5]
    q_pool = 2

    schedule = build_reroll_schedule(input_size, patch_stride, unroll_schedule,
                                     stage_ends, q_pool)

    B, C = 2, 32
    key = jax.random.PRNGKey(0)

    def check(x, blk_schedule, size, tile_rows=None):
        y = reroll_pallas(x, blk_schedule, size, tile_rows=tile_rows)
        y = jax.block_until_ready(y)
        y_ref = reroll_reference(x, blk_schedule, size)
        return (y.shape == (x.shape[0], size[0], size[1], x.shape[2])
                and bool(jnp.array_equal(y, y_ref)))

    ok = True
    # block 0: two-level shuffle; block 2: one-level; block 4: identity fast path.
    for block_idx in (0, 2, 4):
        blk_schedule, size = schedule[block_idx]
        N = size[0] * size[1]
        key, sub = jax.random.split(key)
        x = jax.random.normal(sub, (B, N, C), dtype=jnp.float32)
        ok = ok and check(x, blk_schedule, size)

    # bf16 + forced row-tile tail (tile_rows=5 does not divide H=8 -> exercises
    # the cdiv grid, padded rowbase and clipped final output block).
    blk_schedule, size = schedule[0]
    N = size[0] * size[1]
    key, sub = jax.random.split(key)
    xb = jax.random.normal(sub, (B, N, C), dtype=jnp.float32).astype(jnp.bfloat16)
    ok = ok and check(xb, blk_schedule, size, tile_rows=5)

    if not ok:
        raise SystemExit("Pallas reroll does not match reference")
    print("KERNEL_OK")
</pallas_src>

<mosaic_0001>
module attributes {stable_mosaic.version = 11 : i64} {
  func.func @kernel(%arg0: i32, %arg1: i32, %arg2: memref<8xi32, #tpu.memory_space<smem>>, %arg3: memref<1x64x32xf32, #tpu.memory_space<vmem>>, %arg4: memref<1x8x8x32xf32, #tpu.memory_space<vmem>>) attributes {dimension_semantics = [#tpu.dimension_semantics<parallel>, #tpu.dimension_semantics<parallel>], iteration_bounds = array<i64: 2, 1>, scalar_prefetch = 1 : i64, scratch_operands = 0 : i64, tpu.core_type = #tpu.core_type<tc>, window_params = [{transform_indices = @transform_0, window_bounds = array<i64: 1, 64, 32>}, {transform_indices = @transform_1, window_bounds = array<i64: 1, 8, 8, 32>}]} {
    %c8_i32 = arith.constant 8 : i32
    %0 = arith.muli %arg1, %c8_i32 : i32
    %c0_i32 = arith.constant 0 : i32
    %1 = arith.addi %0, %c0_i32 : i32
    %2 = arith.index_cast %1 : i32 to index
    %3 = memref.load %arg2[%2] : memref<8xi32, #tpu.memory_space<smem>>
    %c0_i32_0 = arith.constant 0 : i32
    %4 = arith.addi %3, %c0_i32_0 : i32
    %c0 = arith.constant 0 : index
    %5 = arith.index_cast %4 : i32 to index
    %c0_1 = arith.constant 0 : index
    %6 = vector.load %arg3[%c0, %5, %c0_1] : memref<1x64x32xf32, #tpu.memory_space<vmem>>, vector<1x1x32xf32>
    %7 = vector.shape_cast %6 : vector<1x1x32xf32> to vector<1x32xf32>
    %c0_2 = arith.constant 0 : index
    %c0_3 = arith.constant 0 : index
    %c0_4 = arith.constant 0 : index
    %c0_5 = arith.constant 0 : index
    %8 = vector.load %arg4[%c0_2, %c0_3, %c0_4, %c0_5] : memref<1x8x8x32xf32, #tpu.memory_space<vmem>>, vector<1x1x1x32xf32>
    %9 = vector.shape_cast %8 : vector<1x1x1x32xf32> to vector<1x32xf32>
    %10 = vector.shape_cast %7 : vector<1x32xf32> to vector<1x1x1x32xf32>
    tpu.vector_store %arg4[%c0_2, %c0_3, %c0_4, %c0_5], %10 {strides = array<i32>} : memref<1x8x8x32xf32, #tpu.memory_space<vmem>>, vector<1x1x1x32xf32>,
    %c16_i32 = arith.constant 16 : i32
    %11 = arith.addi %3, %c16_i32 : i32
    %c0_6 = arith.constant 0 : index
    %12 = arith.index_cast %11 : i32 to index
    %c0_7 = arith.constant 0 : index
    %13 = vector.load %arg3[%c0_6, %12, %c0_7] : memref<1x64x32xf32, #tpu.memory_space<vmem>>, vector<1x1x32xf32>
    %14 = vector.shape_cast %13 : vector<1x1x32xf32> to vector<1x32xf32>
    %c0_8 = arith.constant 0 : index
    %c0_9 = arith.constant 0 : index
    %c1 = arith.constant 1 : index
    %c0_10 = arith.constant 0 : index
    %15 = vector.load %arg4[%c0_8, %c0_9, %c1, %c0_10] : memref<1x8x8x32xf32, #tpu.memory_space<vmem>>, vector<1x1x1x32xf32>
    %16 = vector.shape_cast %15 : vector<1x1x1x32xf32> to vector<1x32xf32>
    %17 = vector.shape_cast %14 : vector<1x32xf32> to vector<1x1x1x32xf32>
    tpu.vector_store %arg4[%c0_8, %c0_9, %c1, %c0_10], %17 {strides = array<i32>} : memref<1x8x8x32xf32, #tpu.memory_space<vmem>>, vector<1x1x1x32xf32>,
    %c4_i32 = arith.constant 4 : i32
    %18 = arith.addi %3, %c4_i32 : i32
    %c0_11 = arith.constant 0 : index
    %19 = arith.index_cast %18 : i32 to index
    %c0_12 = arith.constant 0 : index
    %20 = vector.load %arg3[%c0_11, %19, %c0_12] : memref<1x64x32xf32, #tpu.memory_space<vmem>>, vector<1x1x32xf32>
    %21 = vector.shape_cast %20 : vector<1x1x32xf32> to vector<1x32xf32>
    %c0_13 = arith.constant 0 : index
    %c0_14 = arith.constant 0 : index
    %c2 = arith.constant 2 : index
    %c0_15 = arith.constant 0 : index
    %22 = vector.load %arg4[%c0_13, %c0_14, %c2, %c0_15] : memref<1x8x8x32xf32, #tpu.memory_space<vmem>>, vector<1x1x1x32xf32>
    %23 = vector.shape_cast %22 : vector<1x1x1x32xf32> to vector<1x32xf32>
    %24 = vector.shape_cast %21 : vector<1x32xf32> to vector<1x1x1x32xf32>
    tpu.vector_store %arg4[%c0_13, %c0_14, %c2, %c0_15], %24 {strides = array<i32>} : memref<1x8x8x32xf32, #tpu.memory_space<vmem>>, vector<1x1x1x32xf32>,
    %c20_i32 = arith.constant 20 : i32
    %25 = arith.addi %3, %c20_i32 : i32
    %c0_16 = arith.constant 0 : index
    %26 = arith.index_cast %25 : i32 to index
    %c0_17 = arith.constant 0 : index
    %27 = vector.load %arg3[%c0_16, %26, %c0_17] : memref<1x64x32xf32, #tpu.memory_space<vmem>>, vector<1x1x32xf32>
    %28 = vector.shape_cast %27 : vector<1x1x32xf32> to vector<1x32xf32>
    %c0_18 = arith.constant 0 : index
    %c0_19 = arith.constant 0 : index
    %c3 = arith.constant 3 : index
    %c0_20 = arith.constant 0 : index
    %29 = vector.load %arg4[%c0_18, %c0_19, %c3, %c0_20] : memref<1x8x8x32xf32, #tpu.memory_space<vmem>>, vector<1x1x1x32xf32>
    %30 = vector.shape_cast %29 : vector<1x1x1x32xf32> to vector<1x32xf32>
    %31 = vector.shape_cast %28 : vector<1x32xf32> to vector<1x1x1x32xf32>
    tpu.vector_store %arg4[%c0_18, %c0_19, %c3, %c0_20], %31 {strides = array<i32>} : memref<1x8x8x32xf32, #tpu.memory_space<vmem>>, vector<1x1x1x32xf32>,
    %c1_i32 = arith.constant 1 : i32
    %32 = arith.addi %3, %c1_i32 : i32
    %c0_21 = arith.constant 0 : index
    %33 = arith.index_cast %32 : i32 to index
    %c0_22 = arith.constant 0 : index
    %34 = vector.load %arg3[%c0_21, %33, %c0_22] : memref<1x64x32xf32, #tpu.memory_space<vmem>>, vector<1x1x32xf32>
    %35 = vector.shape_cast %34 : vector<1x1x32xf32> to vector<1x32xf32>
    %c0_23 = arith.constant 0 : index
    %c0_24 = arith.constant 0 : index
    %c4 = arith.constant 4 : index
    %c0_25 = arith.constant 0 : index
    %36 = vector.load %arg4[%c0_23, %c0_24, %c4, %c0_25] : memref<1x8x8x32xf32, #tpu.memory_space<vmem>>, vector<1x1x1x32xf32>
    %37 = vector.shape_cast %36 : vector<1x1x1x32xf32> to vector<1x32xf32>
    %38 = vector.shape_cast %35 : vector<1x32xf32> to vector<1x1x1x32xf32>
    tpu.vector_store %arg4[%c0_23, %c0_24, %c4, %c0_25], %38 {strides = array<i32>} : memref<1x8x8x32xf32, #tpu.memory_space<vmem>>, vector<1x1x1x32xf32>,
    %c17_i32 = arith.constant 17 : i32
    %39 = arith.addi %3, %c17_i32 : i32
    %c0_26 = arith.constant 0 : index
    %40 = arith.index_cast %39 : i32 to index
    %c0_27 = arith.constant 0 : index
    %41 = vector.load %arg3[%c0_26, %40, %c0_27] : memref<1x64x32xf32, #tpu.memory_space<vmem>>, vector<1x1x32xf32>
    %42 = vector.shape_cast %41 : vector<1x1x32xf32> to vector<1x32xf32>
    %c0_28 = arith.constant 0 : index
    %c0_29 = arith.constant 0 : index
    %c5 = arith.constant 5 : index
    %c0_30 = arith.constant 0 : index
    %43 = vector.load %arg4[%c0_28, %c0_29, %c5, %c0_30] : memref<1x8x8x32xf32, #tpu.memory_space<vmem>>, vector<1x1x1x32xf32>
    %44 = vector.shape_cast %43 : vector<1x1x1x32xf32> to vector<1x32xf32>
    %45 = vector.shape_cast %42 : vector<1x32xf32> to vector<1x1x1x32xf32>
    tpu.vector_store %arg4[%c0_28, %c0_29, %c5, %c0_30], %45 {strides = array<i32>} : memref<1x8x8x32xf32, #tpu.memory_space<vmem>>, vector<1x1x1x32xf32>,
    %c5_i32 = arith.constant 5 : i32
    %46 = arith.addi %3, %c5_i32 : i32
    %c0_31 = arith.constant 0 : index
    %47 = arith.index_cast %46 : i32 to index
    %c0_32 = arith.constant 0 : index
    %48 = vector.load %arg3[%c0_31, %47, %c0_32] : memref<1x64x32xf32, #tpu.memory_space<vmem>>, vector<1x1x32xf32>
    %49 = vector.shape_cast %48 : vector<1x1x32xf32> to vector<1x32xf32>
    %c0_33 = arith.constant 0 : index
    %c0_34 = arith.constant 0 : index
    %c6 = arith.constant 6 : index
    %c0_35 = arith.constant 0 : index
    %50 = vector.load %arg4[%c0_33, %c0_34, %c6, %c0_35] : memref<1x8x8x32xf32, #tpu.memory_space<vmem>>, vector<1x1x1x32xf32>
    %51 = vector.shape_cast %50 : vector<1x1x1x32xf32> to vector<1x32xf32>
    %52 = vector.shape_cast %49 : vector<1x32xf32> to vector<1x1x1x32xf32>
    tpu.vector_store %arg4[%c0_33, %c0_34, %c6, %c0_35], %52 {strides = array<i32>} : memref<1x8x8x32xf32, #tpu.memory_space<vmem>>, vector<1x1x1x32xf32>,
    %c21_i32 = arith.constant 21 : i32
    %53 = arith.addi %3, %c21_i32 : i32
    %c0_36 = arith.constant 0 : index
    %54 = arith.index_cast %53 : i32 to index
    %c0_37 = arith.constant 0 : index
    %55 = vector.load %arg3[%c0_36, %54, %c0_37] : memref<1x64x32xf32, #tpu.memory_space<vmem>>, vector<1x1x32xf32>
    %56 = vector.shape_cast %55 : vector<1x1x32xf32> to vector<1x32xf32>
    %c0_38 = arith.constant 0 : index
    %c0_39 = arith.constant 0 : index
    %c7 = arith.constant 7 : index
    %c0_40 = arith.constant 0 : index
    %57 = vector.load %arg4[%c0_38, %c0_39, %c7, %c0_40] : memref<1x8x8x32xf32, #tpu.memory_space<vmem>>, vector<1x1x1x32xf32>
    %58 = vector.shape_cast %57 : vector<1x1x1x32xf32> to vector<1x32xf32>
    %59 = vector.shape_cast %56 : vector<1x32xf32> to vector<1x1x1x32xf32>
    tpu.vector_store %arg4[%c0_38, %c0_39, %c7, %c0_40], %59 {strides = array<i32>} : memref<1x8x8x32xf32, #tpu.memory_space<vmem>>, vector<1x1x1x32xf32>,
    %c1_i32_41 = arith.constant 1 : i32
    %60 = arith.addi %0, %c1_i32_41 : i32
    %61 = arith.index_cast %60 : i32 to index
    %62 = memref.load %arg2[%61] : memref<8xi32, #tpu.memory_space<smem>>
    %c0_i32_42 = arith.constant 0 : i32
    %63 = arith.addi %62, %c0_i32_42 : i32
    %c0_43 = arith.constant 0 : index
    %64 = arith.index_cast %63 : i32 to index
    %c0_44 = arith.constant 0 : index
    %65 = vector.load %arg3[%c0_43, %64, %c0_44] : memref<1x64x32xf32, #tpu.memory_space<vmem>>, vector<1x1x32xf32>
    %66 = vector.shape_cast %65 : vector<1x1x32xf32> to vector<1x32xf32>
    %c0_45 = arith.constant 0 : index
    %c1_46 = arith.constant 1 : index
    %c0_47 = arith.constant 0 : index
    %c0_48 = arith.constant 0 : index
    %67 = vector.load %arg4[%c0_45, %c1_46, %c0_47, %c0_48] : memref<1x8x8x32xf32, #tpu.memory_space<vmem>>, vector<1x1x1x32xf32>
    %68 = vector.shape_cast %67 : vector<1x1x1x32xf32> to vector<1x32xf32>
    %69 = vector.shape_cast %66 : vector<1x32xf32> to vector<1x1x1x32xf32>
    tpu.vector_store %arg4[%c0_45, %c1_46, %c0_47, %c0_48], %69 {strides = array<i32>} : memref<1x8x8x32xf32, #tpu.memory_space<vmem>>, vector<1x1x1x32xf32>,
    %c16_i32_49 = arith.constant 16 : i32
    %70 = arith.addi %62, %c16_i32_49 : i32
    %c0_50 = arith.constant 0 : index
    %71 = arith.index_cast %70 : i32 to index
    %c0_51 = arith.constant 0 : index
    %72 = vector.load %arg3[%c0_50, %71, %c0_51] : memref<1x64x32xf32, #tpu.memory_space<vmem>>, vector<1x1x32xf32>
    %73 = vector.shape_cast %72 : vector<1x1x32xf32> to vector<1x32xf32>
    %c0_52 = arith.constant 0 : index
    %c1_53 = arith.constant 1 : index
    %c1_54 = arith.constant 1 : index
    %c0_55 = arith.constant 0 : index
    %74 = vector.load %arg4[%c0_52, %c1_53, %c1_54, %c0_55] : memref<1x8x8x32xf32, #tpu.memory_space<vmem>>, vector<1x1x1x32xf32>
    %75 = vector.shape_cast %74 : vector<1x1x1x32xf32> to vector<1x32xf32>
    %76 = vector.shape_cast %73 : vector<1x32xf32> to vector<1x1x1x32xf32>
    tpu.vector_store %arg4[%c0_52, %c1_53, %c1_54, %c0_55], %76 {strides = array<i32>} : memref<1x8x8x32xf32, #tpu.memory_space<vmem>>, vector<1x1x1x32xf32>,
    %c4_i32_56 = arith.constant 4 : i32
    %77 = arith.addi %62, %c4_i32_56 : i32
    %c0_57 = arith.constant 0 : index
    %78 = arith.index_cast %77 : i32 to index
    %c0_58 = arith.constant 0 : index
    %79 = vector.load %arg3[%c0_57, %78, %c0_58] : memref<1x64x32xf32, #tpu.memory_space<vmem>>, vector<1x1x32xf32>
    %80 = vector.shape_cast %79 : vector<1x1x32xf32> to vector<1x32xf32>
    %c0_59 = arith.constant 0 : index
    %c1_60 = arith.constant 1 : index
    %c2_61 = arith.constant 2 : index
    %c0_62 = arith.constant 0 : index
    %81 = vector.load %arg4[%c0_59, %c1_60, %c2_61, %c0_62] : memref<1x8x8x32xf32, #tpu.memory_space<vmem>>, vector<1x1x1x32xf32>
    %82 = vector.shape_cast %81 : vector<1x1x1x32xf32> to vector<1x32xf32>
    %83 = vector.shape_cast %80 : vector<1x32xf32> to vector<1x1x1x32xf32>
    tpu.vector_store %arg4[%c0_59, %c1_60, %c2_61, %c0_62], %83 {strides = array<i32>} : memref<1x8x8x32xf32, #tpu.memory_space<vmem>>, vector<1x1x1x32xf32>,
    %c20_i32_63 = arith.constant 20 : i32
    %84 = arith.addi %62, %c20_i32_63 : i32
    %c0_64 = arith.constant 0 : index
    %85 = arith.index_cast %84 : i32 to index
    %c0_65 = arith.constant 0 : index
    %86 = vector.load %arg3[%c0_64, %85, %c0_65] : memref<1x64x32xf32, #tpu.memory_space<vmem>>, vector<1x1x32xf32>
    %87 = vector.shape_cast %86 : vector<1x1x32xf32> to vector<1x32xf32>
    %c0_66 = arith.constant 0 : index
    %c1_67 = arith.constant 1 : index
    %c3_68 = arith.constant 3 : index
    %c0_69 = arith.constant 0 : index
    %88 = vector.load %arg4[%c0_66, %c1_67, %c3_68, %c0_69] : memref<1x8x8x32xf32, #tpu.memory_space<vmem>>, vector<1x1x1x32xf32>
    %89 = vector.shape_cast %88 : vector<1x1x1x32xf32> to vector<1x32xf32>
    %90 = vector.shape_cast %87 : vector<1x32xf32> to vector<1x1x1x32xf32>
    tpu.vector_store %arg4[%c0_66, %c1_67, %c3_68, %c0_69], %90 {strides = array<i32>} : memref<1x8x8x32xf32, #tpu.memory_space<vmem>>, vector<1x1x1x32xf32>,
    %c1_i32_70 = arith.constant 1 : i32
    %91 = arith.addi %62, %c1_i32_70 : i32
    %c0_71 = arith.constant 0 : index
    %92 = arith.index_cast %91 : i32 to index
    %c0_72 = arith.constant 0 : index
    %93 = vector.load %arg3[%c0_71, %92, %c0_72] : memref<1x64x32xf32, #tpu.memory_space<vmem>>, vector<1x1x32xf32>
    %94 = vector.shape_cast %93 : vector<1x1x32xf32> to vector<1x32xf32>
    %c0_73 = arith.constant 0 : index
    %c1_74 = arith.constant 1 : index
    %c4_75 = arith.constant 4 : index
    %c0_76 = arith.constant 0 : index
    %95 = vector.load %arg4[%c0_73, %c1_74, %c4_75, %c0_76] : memref<1x8x8x32xf32, #tpu.memory_space<vmem>>, vector<1x1x1x32xf32>
    %96 = vector.shape_cast %95 : vector<1x1x1x32xf32> to vector<1x32xf32>
    %97 = vector.shape_cast %94 : vector<1x32xf32> to vector<1x1x1x32xf32>
    tpu.vector_store %arg4[%c0_73, %c1_74, %c4_75, %c0_76], %97 {strides = array<i32>} : memref<1x8x8x32xf32, #tpu.memory_space<vmem>>, vector<1x1x1x32xf32>,
    %c17_i32_77 = arith.constant 17 : i32
    %98 = arith.addi %62, %c17_i32_77 : i32
    %c0_78 = arith.constant 0 : index
    %99 = arith.index_cast %98 : i32 to index
    %c0_79 = arith.constant 0 : index
    %100 = vector.load %arg3[%c0_78, %99, %c0_79] : memref<1x64x32xf32, #tpu.memory_space<vmem>>, vector<1x1x32xf32>
    %101 = vector.shape_cast %100 : vector<1x1x32xf32> to vector<1x32xf32>
    %c0_80 = arith.constant 0 : index
    %c1_81 = arith.constant 1 : index
    %c5_82 = arith.constant 5 : index
    %c0_83 = arith.constant 0 : index
    %102 = vector.load %arg4[%c0_80, %c1_81, %c5_82, %c0_83] : memref<1x8x8x32xf32, #tpu.memory_space<vmem>>, vector<1x1x1x32xf32>
    %103 = vector.shape_cast %102 : vector<1x1x1x32xf32> to vector<1x32xf32>
    %104 = vector.shape_cast %101 : vector<1x32xf32> to vector<1x1x1x32xf32>
    tpu.vector_store %arg4[%c0_80, %c1_81, %c5_82, %c0_83], %104 {strides = array<i32>} : memref<1x8x8x32xf32, #tpu.memory_space<vmem>>, vector<1x1x1x32xf32>,
    %c5_i32_84 = arith.constant 5 : i32
    %105 = arith.addi %62, %c5_i32_84 : i32
    %c0_85 = arith.constant 0 : index
    %106 = arith.index_cast %105 : i32 to index
    %c0_86 = arith.constant 0 : index
    %107 = vector.load %arg3[%c0_85, %106, %c0_86] : memref<1x64x32xf32, #tpu.memory_space<vmem>>, vector<1x1x32xf32>
    %108 = vector.shape_cast %107 : vector<1x1x32xf32> to vector<1x32xf32>
    %c0_87 = arith.constant 0 : index
    %c1_88 = arith.constant 1 : index
    %c6_89 = arith.constant 6 : index
    %c0_90 = arith.constant 0 : index
    %109 = vector.load %arg4[%c0_87, %c1_88, %c6_89, %c0_90] : memref<1x8x8x32xf32, #tpu.memory_space<vmem>>, vector<1x1x1x32xf32>
    %110 = vector.shape_cast %109 : vector<1x1x1x32xf32> to vector<1x32xf32>
    %111 = vector.shape_cast %108 : vector<1x32xf32> to vector<1x1x1x32xf32>
    tpu.vector_store %arg4[%c0_87, %c1_88, %c6_89, %c0_90], %111 {strides = array<i32>} : memref<1x8x8x32xf32, #tpu.memory_space<vmem>>, vector<1x1x1x32xf32>,
    %c21_i32_91 = arith.constant 21 : i32
    %112 = arith.addi %62, %c21_i32_91 : i32
    %c0_92 = arith.constant 0 : index
    %113 = arith.index_cast %112 : i32 to index
    %c0_93 = arith.constant 0 : index
    %114 = vector.load %arg3[%c0_92, %113, %c0_93] : memref<1x64x32xf32, #tpu.memory_space<vmem>>, vector<1x1x32xf32>
    %115 = vector.shape_cast %114 : vector<1x1x32xf32> to vector<1x32xf32>
    %c0_94 = arith.constant 0 : index
    %c1_95 = arith.constant 1 : index
    %c7_96 = arith.constant 7 : index
    %c0_97 = arith.constant 0 : index
    %116 = vector.load %arg4[%c0_94, %c1_95, %c7_96, %c0_97] : memref<1x8x8x32xf32, #tpu.memory_space<vmem>>, vector<1x1x1x32xf32>
    %117 = vector.shape_cast %116 : vector<1x1x1x32xf32> to vector<1x32xf32>
    %118 = vector.shape_cast %115 : vector<1x32xf32> to vector<1x1x1x32xf32>
    tpu.vector_store %arg4[%c0_94, %c1_95, %c7_96, %c0_97], %118 {strides = array<i32>} : memref<1x8x8x32xf32, #tpu.memory_space<vmem>>, vector<1x1x1x32xf32>,
    %c2_i32 = arith.constant 2 : i32
    %119 = arith.addi %0, %c2_i32 : i32
    %120 = arith.index_cast %119 : i32 to index
    %121 = memref.load %arg2[%120] : memref<8xi32, #tpu.memory_space<smem>>
    %c0_i32_98 = arith.constant 0 : i32
    %122 = arith.addi %121, %c0_i32_98 : i32
    %c0_99 = arith.constant 0 : index
    %123 = arith.index_cast %122 : i32 to index
    %c0_100 = arith.constant 0 : index
    %124 = vector.load %arg3[%c0_99, %123, %c0_100] : memref<1x64x32xf32, #tpu.memory_space<vmem>>, vector<1x1x32xf32>
    %125 = vector.shape_cast %124 : vector<1x1x32xf32> to vector<1x32xf32>
    %c0_101 = arith.constant 0 : index
    %c2_102 = arith.constant 2 : index
    %c0_103 = arith.constant 0 : index
    %c0_104 = arith.constant 0 : index
    %126 = vector.load %arg4[%c0_101, %c2_102, %c0_103, %c0_104] : memref<1x8x8x32xf32, #tpu.memory_space<vmem>>, vector<1x1x1x32xf32>
    %127 = vector.shape_cast %126 : vector<1x1x1x32xf32> to vector<1x32xf32>
    %128 = vector.shape_cast %125 : vector<1x32xf32> to vector<1x1x1x32xf32>
    tpu.vector_store %arg4[%c0_101, %c2_102, %c0_103, %c0_104], %128 {strides = array<i32>} : memref<1x8x8x32xf32, #tpu.memory_space<vmem>>, vector<1x1x1x32xf32>,
    %c16_i32_105 = arith.constant 16 : i32
    %129 = arith.addi %121, %c16_i32_105 : i32
    %c0_106 = arith.constant 0 : index
    %130 = arith.index_cast %129 : i32 to index
    %c0_107 = arith.constant 0 : index
    %131 = vector.load %arg3[%c0_106, %130, %c0_107] : memref<1x64x32xf32, #tpu.memory_space<vmem>>, vector<1x1x32xf32>
    %132 = vector.shape_cast %131 : vector<1x1x32xf32> to vector<1x32xf32>
    %c0_108 = arith.constant 0 : index
    %c2_109 = arith.constant 2 : index
    %c1_110 = arith.constant 1 : index
    %c0_111 = arith.constant 0 : index
    %133 = vector.load %arg4[%c0_108, %c2_109, %c1_110, %c0_111] : memref<1x8x8x32xf32, #tpu.memory_space<vmem>>, vector<1x1x1x32xf32>
    %134 = vector.shape_cast %133 : vector<1x1x1x32xf32> to vector<1x32xf32>
    %135 = vector.shape_cast %132 : vector<1x32xf32> to vector<1x1x1x32xf32>
    tpu.vector_store %arg4[%c0_108, %c2_109, %c1_110, %c0_111], %135 {strides = array<i32>} : memref<1x8x8x32xf32, #tpu.memory_space<vmem>>, vector<1x1x1x32xf32>,
    %c4_i32_112 = arith.constant 4 : i32
    %136 = arith.addi %121, %c4_i32_112 : i32
    %c0_113 = arith.constant 0 : index
    %137 = arith.index_cast %136 : i32 to index
    %c0_114 = arith.constant 0 : index
    %138 = vector.load %arg3[%c0_113, %137, %c0_114] : memref<1x64x32xf32, #tpu.memory_space<vmem>>, vector<1x1x32xf32>
    %139 = vector.shape_cast %138 : vector<1x1x32xf32> to vector<1x32xf32>
    %c0_115 = arith.constant 0 : index
    %c2_116 = arith.constant 2 : index
    %c2_117 = arith.constant 2 : index
    %c0_118 = arith.constant 0 : index
    %140 = vector.load %arg4[%c0_115, %c2_116, %c2_117, %c0_118] : memref<1x8x8x32xf32, #tpu.memory_space<vmem>>, vector<1x1x1x32xf32>
    %141 = vector.shape_cast %140 : vector<1x1x1x32xf32> to vector<1x32xf32>
    %142 = vector.shape_cast %139 : vector<1x32xf32> to vector<1x1x1x32xf32>
    tpu.vector_store %arg4[%c0_115, %c2_116, %c2_117, %c0_118], %142 {strides = array<i32>} : memref<1x8x8x32xf32, #tpu.memory_space<vmem>>, vector<1x1x1x32xf32>,
    %c20_i32_119 = arith.constant 20 : i32
    %143 = arith.addi %121, %c20_i32_119 : i32
    %c0_120 = arith.constant 0 : index
    %144 = arith.index_cast %143 : i32 to index
    %c0_121 = arith.constant 0 : index
    %145 = vector.load %arg3[%c0_120, %144, %c0_121] : memref<1x64x32xf32, #tpu.memory_space<vmem>>, vector<1x1x32xf32>
    %146 = vector.shape_cast %145 : vector<1x1x32xf32> to vector<1x32xf32>
    %c0_122 = arith.constant 0 : index
    %c2_123 = arith.constant 2 : index
    %c3_124 = arith.constant 3 : index
    %c0_125 = arith.constant 0 : index
    %147 = vector.load %arg4[%c0_122, %c2_123, %c3_124, %c0_125] : memref<1x8x8x32xf32, #tpu.memory_space<vmem>>, vector<1x1x1x32xf32>
    %148 = vector.shape_cast %147 : vector<1x1x1x32xf32> to vector<1x32xf32>
    %149 = vector.shape_cast %146 : vector<1x32xf32> to vector<1x1x1x32xf32>
    tpu.vector_store %arg4[%c0_122, %c2_123, %c3_124, %c0_125], %149 {strides = array<i32>} : memref<1x8x8x32xf32, #tpu.memory_space<vmem>>, vector<1x1x1x32xf32>,
    %c1_i32_126 = arith.constant 1 : i32
    %150 = arith.addi %121, %c1_i32_126 : i32
    %c0_127 = arith.constant 0 : index
    %151 = arith.index_cast %150 : i32 to index
    %c0_128 = arith.constant 0 : index
    %152 = vector.load %arg3[%c0_127, %151, %c0_128] : memref<1x64x32xf32, #tpu.memory_space<vmem>>, vector<1x1x32xf32>
    %153 = vector.shape_cast %152 : vector<1x1x32xf32> to vector<1x32xf32>
    %c0_129 = arith.constant 0 : index
    %c2_130 = arith.constant 2 : index
    %c4_131 = arith.constant 4 : index
    %c0_132 = arith.constant 0 : index
    %154 = vector.load %arg4[%c0_129, %c2_130, %c4_131, %c0_132] : memref<1x8x8x32xf32, #tpu.memory_space<vmem>>, vector<1x1x1x32xf32>
    %155 = vector.shape_cast %154 : vector<1x1x1x32xf32> to vector<1x32xf32>
    %156 = vector.shape_cast %153 : vector<1x32xf32> to vector<1x1x1x32xf32>
    tpu.vector_store %arg4[%c0_129, %c2_130, %c4_131, %c0_132], %156 {strides = array<i32>} : memref<1x8x8x32xf32, #tpu.memory_space<vmem>>, vector<1x1x1x32xf32>,
    %c17_i32_133 = arith.constant 17 : i32
    %157 = arith.addi %121, %c17_i32_133 : i32
    %c0_134 = arith.constant 0 : index
    %158 = arith.index_cast %157 : i32 to index
    %c0_135 = arith.constant 0 : index
    %159 = vector.load %arg3[%c0_134, %158, %c0_135] : memref<1x64x32xf32, #tpu.memory_space<vmem>>, vector<1x1x32xf32>
    %160 = vector.shape_cast %159 : vector<1x1x32xf32> to vector<1x32xf32>
    %c0_136 = arith.constant 0 : index
    %c2_137 = arith.constant 2 : index
    %c5_138 = arith.constant 5 : index
    %c0_139 = arith.constant 0 : index
    %161 = vector.load %arg4[%c0_136, %c2_137, %c5_138, %c0_139] : memref<1x8x8x32xf32, #tpu.memory_space<vmem>>, vector<1x1x1x32xf32>
    %162 = vector.shape_cast %161 : vector<1x1x1x32xf32> to vector<1x32xf32>
    %163 = vector.shape_cast %160 : vector<1x32xf32> to vector<1x1x1x32xf32>
    tpu.vector_store %arg4[%c0_136, %c2_137, %c5_138, %c0_139], %163 {strides = array<i32>} : memref<1x8x8x32xf32, #tpu.memory_space<vmem>>, vector<1x1x1x32xf32>,
    %c5_i32_140 = arith.constant 5 : i32
    %164 = arith.addi %121, %c5_i32_140 : i32
    %c0_141 = arith.constant 0 : index
    %165 = arith.index_cast %164 : i32 to index
    %c0_142 = arith.constant 0 : index
    %166 = vector.load %arg3[%c0_141, %165, %c0_142] : memref<1x64x32xf32, #tpu.memory_space<vmem>>, vector<1x1x32xf32>
    %167 = vector.shape_cast %166 : vector<1x1x32xf32> to vector<1x32xf32>
    %c0_143 = arith.constant 0 : index
    %c2_144 = arith.constant 2 : index
    %c6_145 = arith.constant 6 : index
    %c0_146 = arith.constant 0 : index
    %168 = vector.load %arg4[%c0_143, %c2_144, %c6_145, %c0_146] : memref<1x8x8x32xf32, #tpu.memory_space<vmem>>, vector<1x1x1x32xf32>
    %169 = vector.shape_cast %168 : vector<1x1x1x32xf32> to vector<1x32xf32>
    %170 = vector.shape_cast %167 : vector<1x32xf32> to vector<1x1x1x32xf32>
    tpu.vector_store %arg4[%c0_143, %c2_144, %c6_145, %c0_146], %170 {strides = array<i32>} : memref<1x8x8x32xf32, #tpu.memory_space<vmem>>, vector<1x1x1x32xf32>,
    %c21_i32_147 = arith.constant 21 : i32
    %171 = arith.addi %121, %c21_i32_147 : i32
    %c0_148 = arith.constant 0 : index
    %172 = arith.index_cast %171 : i32 to index
    %c0_149 = arith.constant 0 : index
    %173 = vector.load %arg3[%c0_148, %172, %c0_149] : memref<1x64x32xf32, #tpu.memory_space<vmem>>, vector<1x1x32xf32>
    %174 = vector.shape_cast %173 : vector<1x1x32xf32> to vector<1x32xf32>
    %c0_150 = arith.constant 0 : index
    %c2_151 = arith.constant 2 : index
    %c7_152 = arith.constant 7 : index
    %c0_153 = arith.constant 0 : index
    %175 = vector.load %arg4[%c0_150, %c2_151, %c7_152, %c0_153] : memref<1x8x8x32xf32, #tpu.memory_space<vmem>>, vector<1x1x1x32xf32>
    %176 = vector.shape_cast %175 : vector<1x1x1x32xf32> to vector<1x32xf32>
    %177 = vector.shape_cast %174 : vector<1x32xf32> to vector<1x1x1x32xf32>
    tpu.vector_store %arg4[%c0_150, %c2_151, %c7_152, %c0_153], %177 {strides = array<i32>} : memref<1x8x8x32xf32, #tpu.memory_space<vmem>>, vector<1x1x1x32xf32>,
    %c3_i32 = arith.constant 3 : i32
    %178 = arith.addi %0, %c3_i32 : i32
    %179 = arith.index_cast %178 : i32 to index
    %180 = memref.load %arg2[%179] : memref<8xi32, #tpu.memory_space<smem>>
    %c0_i32_154 = arith.constant 0 : i32
    %181 = arith.addi %180, %c0_i32_154 : i32
    %c0_155 = arith.constant 0 : index
    %182 = arith.index_cast %181 : i32 to index
    %c0_156 = arith.constant 0 : index
    %183 = vector.load %arg3[%c0_155, %182, %c0_156] : memref<1x64x32xf32, #tpu.memory_space<vmem>>, vector<1x1x32xf32>
    %184 = vector.shape_cast %183 : vector<1x1x32xf32> to vector<1x32xf32>
    %c0_157 = arith.constant 0 : index
    %c3_158 = arith.constant 3 : index
    %c0_159 = arith.constant 0 : index
    %c0_160 = arith.constant 0 : index
    %185 = vector.load %arg4[%c0_157, %c3_158, %c0_159, %c0_160] : memref<1x8x8x32xf32, #tpu.memory_space<vmem>>, vector<1x1x1x32xf32>
    %186 = vector.shape_cast %185 : vector<1x1x1x32xf32> to vector<1x32xf32>
    %187 = vector.shape_cast %184 : vector<1x32xf32> to vector<1x1x1x32xf32>
    tpu.vector_store %arg4[%c0_157, %c3_158, %c0_159, %c0_160], %187 {strides = array<i32>} : memref<1x8x8x32xf32, #tpu.memory_space<vmem>>, vector<1x1x1x32xf32>,
    %c16_i32_161 = arith.constant 16 : i32
    %188 = arith.addi %180, %c16_i32_161 : i32
    %c0_162 = arith.constant 0 : index
    %189 = arith.index_cast %188 : i32 to index
    %c0_163 = arith.constant 0 : index
    %190 = vector.load %arg3[%c0_162, %189, %c0_163] : memref<1x64x32xf32, #tpu.memory_space<vmem>>, vector<1x1x32xf32>
    %191 = vector.shape_cast %190 : vector<1x1x32xf32> to vector<1x32xf32>
    %c0_164 = arith.constant 0 : index
    %c3_165 = arith.constant 3 : index
    %c1_166 = arith.constant 1 : index
    %c0_167 = arith.constant 0 : index
    %192 = vector.load %arg4[%c0_164, %c3_165, %c1_166, %c0_167] : memref<1x8x8x32xf32, #tpu.memory_space<vmem>>, vector<1x1x1x32xf32>
    %193 = vector.shape_cast %192 : vector<1x1x1x32xf32> to vector<1x32xf32>
    %194 = vector.shape_cast %191 : vector<1x32xf32> to vector<1x1x1x32xf32>
    tpu.vector_store %arg4[%c0_164, %c3_165, %c1_166, %c0_167], %194 {strides = array<i32>} : memref<1x8x8x32xf32, #tpu.memory_space<vmem>>, vector<1x1x1x32xf32>,
    %c4_i32_168 = arith.constant 4 : i32
    %195 = arith.addi %180, %c4_i32_168 : i32
    %c0_169 = arith.constant 0 : index
    %196 = arith.index_cast %195 : i32 to index
    %c0_170 = arith.constant 0 : index
    %197 = vector.load %arg3[%c0_169, %196, %c0_170] : memref<1x64x32xf32, #tpu.memory_space<vmem>>, vector<1x1x32xf32>
    %198 = vector.shape_cast %197 : vector<1x1x32xf32> to vector<1x32xf32>
    %c0_171 = arith.constant 0 : index
    %c3_172 = arith.constant 3 : index
    %c2_173 = arith.constant 2 : index
    %c0_174 = arith.constant 0 : index
    %199 = vector.load %arg4[%c0_171, %c3_172, %c2_173, %c0_174] : memref<1x8x8x32xf32, #tpu.memory_space<vmem>>, vector<1x1x1x32xf32>
    %200 = vector.shape_cast %199 : vector<1x1x1x32xf32> to vector<1x32xf32>
    %201 = vector.shape_cast %198 : vector<1x32xf32> to vector<1x1x1x32xf32>
    tpu.vector_store %arg4[%c0_171, %c3_172, %c2_173, %c0_174], %201 {strides = array<i32>} : memref<1x8x8x32xf32, #tpu.memory_space<vmem>>, vector<1x1x1x32xf32>,
    %c20_i32_175 = arith.constant 20 : i32
    %202 = arith.addi %180, %c20_i32_175 : i32
    %c0_176 = arith.constant 0 : index
    %203 = arith.index_cast %202 : i32 to index
    %c0_177 = arith.constant 0 : index
    %204 = vector.load %arg3[%c0_176, %203, %c0_177] : memref<1x64x32xf32, #tpu.memory_space<vmem>>, vector<1x1x32xf32>
    %205 = vector.shape_cast %204 : vector<1x1x32xf32> to vector<1x32xf32>
    %c0_178 = arith.constant 0 : index
    %c3_179 = arith.constant 3 : index
    %c3_180 = arith.constant 3 : index
    %c0_181 = arith.constant 0 : index
    %206 = vector.load %arg4[%c0_178, %c3_179, %c3_180, %c0_181] : memref<1x8x8x32xf32, #tpu.memory_space<vmem>>, vector<1x1x1x32xf32>
    %207 = vector.shape_cast %206 : vector<1x1x1x32xf32> to vector<1x32xf32>
    %208 = vector.shape_cast %205 : vector<1x32xf32> to vector<1x1x1x32xf32>
    tpu.vector_store %arg4[%c0_178, %c3_179, %c3_180, %c0_181], %208 {strides = array<i32>} : memref<1x8x8x32xf32, #tpu.memory_space<vmem>>, vector<1x1x1x32xf32>,
    %c1_i32_182 = arith.constant 1 : i32
    %209 = arith.addi %180, %c1_i32_182 : i32
    %c0_183 = arith.constant 0 : index
    %210 = arith.index_cast %209 : i32 to index
    %c0_184 = arith.constant 0 : index
    %211 = vector.load %arg3[%c0_183, %210, %c0_184] : memref<1x64x32xf32, #tpu.memory_space<vmem>>, vector<1x1x32xf32>
    %212 = vector.shape_cast %211 : vector<1x1x32xf32> to vector<1x32xf32>
    %c0_185 = arith.constant 0 : index
    %c3_186 = arith.constant 3 : index
    %c4_187 = arith.constant 4 : index
    %c0_188 = arith.constant 0 : index
    %213 = vector.load %arg4[%c0_185, %c3_186, %c4_187, %c0_188] : memref<1x8x8x32xf32, #tpu.memory_space<vmem>>, vector<1x1x1x32xf32>
    %214 = vector.shape_cast %213 : vector<1x1x1x32xf32> to vector<1x32xf32>
    %215 = vector.shape_cast %212 : vector<1x32xf32> to vector<1x1x1x32xf32>
    tpu.vector_store %arg4[%c0_185, %c3_186, %c4_187, %c0_188], %215 {strides = array<i32>} : memref<1x8x8x32xf32, #tpu.memory_space<vmem>>, vector<1x1x1x32xf32>,
    %c17_i32_189 = arith.constant 17 : i32
    %216 = arith.addi %180, %c17_i32_189 : i32
    %c0_190 = arith.constant 0 : index
    %217 = arith.index_cast %216 : i32 to index
    %c0_191 = arith.constant 0 : index
    %218 = vector.load %arg3[%c0_190, %217, %c0_191] : memref<1x64x32xf32, #tpu.memory_space<vmem>>, vector<1x1x32xf32>
    %219 = vector.shape_cast %218 : vector<1x1x32xf32> to vector<1x32xf32>
    %c0_192 = arith.constant 0 : index
    %c3_193 = arith.constant 3 : index
    %c5_194 = arith.constant 5 : index
    %c0_195 = arith.constant 0 : index
    %220 = vector.load %arg4[%c0_192, %c3_193, %c5_194, %c0_195] : memref<1x8x8x32xf32, #tpu.memory_space<vmem>>, vector<1x1x1x32xf32>
    %221 = vector.shape_cast %220 : vector<1x1x1x32xf32> to vector<1x32xf32>
    %222 = vector.shape_cast %219 : vector<1x32xf32> to vector<1x1x1x32xf32>
    tpu.vector_store %arg4[%c0_192, %c3_193, %c5_194, %c0_195], %222 {strides = array<i32>} : memref<1x8x8x32xf32, #tpu.memory_space<vmem>>, vector<1x1x1x32xf32>,
    %c5_i32_196 = arith.constant 5 : i32
    %223 = arith.addi %180, %c5_i32_196 : i32
    %c0_197 = arith.constant 0 : index
    %224 = arith.index_cast %223 : i32 to index
    %c0_198 = arith.constant 0 : index
    %225 = vector.load %arg3[%c0_197, %224, %c0_198] : memref<1x64x32xf32, #tpu.memory_space<vmem>>, vector<1x1x32xf32>
    %226 = vector.shape_cast %225 : vector<1x1x32xf32> to vector<1x32xf32>
    %c0_199 = arith.constant 0 : index
    %c3_200 = arith.constant 3 : index
    %c6_201 = arith.constant 6 : index
    %c0_202 = arith.constant 0 : index
    %227 = vector.load %arg4[%c0_199, %c3_200, %c6_201, %c0_202] : memref<1x8x8x32xf32, #tpu.memory_space<vmem>>, vector<1x1x1x32xf32>
    %228 = vector.shape_cast %227 : vector<1x1x1x32xf32> to vector<1x32xf32>
    %229 = vector.shape_cast %226 : vector<1x32xf32> to vector<1x1x1x32xf32>
    tpu.vector_store %arg4[%c0_199, %c3_200, %c6_201, %c0_202], %229 {strides = array<i32>} : memref<1x8x8x32xf32, #tpu.memory_space<vmem>>, vector<1x1x1x32xf32>,
    %c21_i32_203 = arith.constant 21 : i32
    %230 = arith.addi %180, %c21_i32_203 : i32
    %c0_204 = arith.constant 0 : index
    %231 = arith.index_cast %230 : i32 to index
    %c0_205 = arith.constant 0 : index
    %232 = vector.load %arg3[%c0_204, %231, %c0_205] : memref<1x64x32xf32, #tpu.memory_space<vmem>>, vector<1x1x32xf32>
    %233 = vector.shape_cast %232 : vector<1x1x32xf32> to vector<1x32xf32>
    %c0_206 = arith.constant 0 : index
    %c3_207 = arith.constant 3 : index
    %c7_208 = arith.constant 7 : index
    %c0_209 = arith.constant 0 : index
    %234 = vector.load %arg4[%c0_206, %c3_207, %c7_208, %c0_209] : memref<1x8x8x32xf32, #tpu.memory_space<vmem>>, vector<1x1x1x32xf32>
    %235 = vector.shape_cast %234 : vector<1x1x1x32xf32> to vector<1x32xf32>
    %236 = vector.shape_cast %233 : vector<1x32xf32> to vector<1x1x1x32xf32>
    tpu.vector_store %arg4[%c0_206, %c3_207, %c7_208, %c0_209], %236 {strides = array<i32>} : memref<1x8x8x32xf32, #tpu.memory_space<vmem>>, vector<1x1x1x32xf32>,
    %c4_i32_210 = arith.constant 4 : i32
    %237 = arith.addi %0, %c4_i32_210 : i32
    %238 = arith.index_cast %237 : i32 to index
    %239 = memref.load %arg2[%238] : memref<8xi32, #tpu.memory_space<smem>>
    %c0_i32_211 = arith.constant 0 : i32
    %240 = arith.addi %239, %c0_i32_211 : i32
    %c0_212 = arith.constant 0 : index
    %241 = arith.index_cast %240 : i32 to index
    %c0_213 = arith.constant 0 : index
    %242 = vector.load %arg3[%c0_212, %241, %c0_213] : memref<1x64x32xf32, #tpu.memory_space<vmem>>, vector<1x1x32xf32>
    %243 = vector.shape_cast %242 : vector<1x1x32xf32> to vector<1x32xf32>
    %c0_214 = arith.constant 0 : index
    %c4_215 = arith.constant 4 : index
    %c0_216 = arith.constant 0 : index
    %c0_217 = arith.constant 0 : index
    %244 = vector.load %arg4[%c0_214, %c4_215, %c0_216, %c0_217] : memref<1x8x8x32xf32, #tpu.memory_space<vmem>>, vector<1x1x1x32xf32>
    %245 = vector.shape_cast %244 : vector<1x1x1x32xf32> to vector<1x32xf32>
    %246 = vector.shape_cast %243 : vector<1x32xf32> to vector<1x1x1x32xf32>
    tpu.vector_store %arg4[%c0_214, %c4_215, %c0_216, %c0_217], %246 {strides = array<i32>} : memref<1x8x8x32xf32, #tpu.memory_space<vmem>>, vector<1x1x1x32xf32>,
    %c16_i32_218 = arith.constant 16 : i32
    %247 = arith.addi %239, %c16_i32_218 : i32
    %c0_219 = arith.constant 0 : index
    %248 = arith.index_cast %247 : i32 to index
    %c0_220 = arith.constant 0 : index
    %249 = vector.load %arg3[%c0_219, %248, %c0_220] : memref<1x64x32xf32, #tpu.memory_space<vmem>>, vector<1x1x32xf32>
    %250 = vector.shape_cast %249 : vector<1x1x32xf32> to vector<1x32xf32>
    %c0_221 = arith.constant 0 : index
    %c4_222 = arith.constant 4 : index
    %c1_223 = arith.constant 1 : index
    %c0_224 = arith.constant 0 : index
    %251 = vector.load %arg4[%c0_221, %c4_222, %c1_223, %c0_224] : memref<1x8x8x32xf32, #tpu.memory_space<vmem>>, vector<1x1x1x32xf32>
    %252 = vector.shape_cast %251 : vector<1x1x1x32xf32> to vector<1x32xf32>
    %253 = vector.shape_cast %250 : vector<1x32xf32> to vector<1x1x1x32xf32>
    tpu.vector_store %arg4[%c0_221, %c4_222, %c1_223, %c0_224], %253 {strides = array<i32>} : memref<1x8x8x32xf32, #tpu.memory_space<vmem>>, vector<1x1x1x32xf32>,
    %c4_i32_225 = arith.constant 4 : i32
    %254 = arith.addi %239, %c4_i32_225 : i32
    %c0_226 = arith.constant 0 : index
    %255 = arith.index_cast %254 : i32 to index
    %c0_227 = arith.constant 0 : index
    %256 = vector.load %arg3[%c0_226, %255, %c0_227] : memref<1x64x32xf32, #tpu.memory_space<vmem>>, vector<1x1x32xf32>
    %257 = vector.shape_cast %256 : vector<1x1x32xf32> to vector<1x32xf32>
    %c0_228 = arith.constant 0 : index
    %c4_229 = arith.constant 4 : index
    %c2_230 = arith.constant 2 : index
    %c0_231 = arith.constant 0 : index
    %258 = vector.load %arg4[%c0_228, %c4_229, %c2_230, %c0_231] : memref<1x8x8x32xf32, #tpu.memory_space<vmem>>, vector<1x1x1x32xf32>
    %259 = vector.shape_cast %258 : vector<1x1x1x32xf32> to vector<1x32xf32>
    %260 = vector.shape_cast %257 : vector<1x32xf32> to vector<1x1x1x32xf32>
    tpu.vector_store %arg4[%c0_228, %c4_229, %c2_230, %c0_231], %260 {strides = array<i32>} : memref<1x8x8x32xf32, #tpu.memory_space<vmem>>, vector<1x1x1x32xf32>,
    %c20_i32_232 = arith.constant 20 : i32
    %261 = arith.addi %239, %c20_i32_232 : i32
    %c0_233 = arith.constant 0 : index
    %262 = arith.index_cast %261 : i32 to index
    %c0_234 = arith.constant 0 : index
    %263 = vector.load %arg3[%c0_233, %262, %c0_234] : memref<1x64x32xf32, #tpu.memory_space<vmem>>, vector<1x1x32xf32>
    %264 = vector.shape_cast %263 : vector<1x1x32xf32> to vector<1x32xf32>
    %c0_235 = arith.constant 0 : index
    %c4_236 = arith.constant 4 : index
    %c3_237 = arith.constant 3 : index
    %c0_238 = arith.constant 0 : index
    %265 = vector.load %arg4[%c0_235, %c4_236, %c3_237, %c0_238] : memref<1x8x8x32xf32, #tpu.memory_space<vmem>>, vector<1x1x1x32xf32>
    %266 = vector.shape_cast %265 : vector<1x1x1x32xf32> to vector<1x32xf32>
    %267 = vector.shape_cast %264 : vector<1x32xf32> to vector<1x1x1x32xf32>
    tpu.vector_store %arg4[%c0_235, %c4_236, %c3_237, %c0_238], %267 {strides = array<i32>} : memref<1x8x8x32xf32, #tpu.memory_space<vmem>>, vector<1x1x1x32xf32>,
    %c1_i32_239 = arith.constant 1 : i32
    %268 = arith.addi %239, %c1_i32_239 : i32
    %c0_240 = arith.constant 0 : index
    %269 = arith.index_cast %268 : i32 to index
    %c0_241 = arith.constant 0 : index
    %270 = vector.load %arg3[%c0_240, %269, %c0_241] : memref<1x64x32xf32, #tpu.memory_space<vmem>>, vector<1x1x32xf32>
    %271 = vector.shape_cast %270 : vector<1x1x32xf32> to vector<1x32xf32>
    %c0_242 = arith.constant 0 : index
    %c4_243 = arith.constant 4 : index
    %c4_244 = arith.constant 4 : index
    %c0_245 = arith.constant 0 : index
    %272 = vector.load %arg4[%c0_242, %c4_243, %c4_244, %c0_245] : memref<1x8x8x32xf32, #tpu.memory_space<vmem>>, vector<1x1x1x32xf32>
    %273 = vector.shape_cast %272 : vector<1x1x1x32xf32> to vector<1x32xf32>
    %274 = vector.shape_cast %271 : vector<1x32xf32> to vector<1x1x1x32xf32>
    tpu.vector_store %arg4[%c0_242, %c4_243, %c4_244, %c0_245], %274 {strides = array<i32>} : memref<1x8x8x32xf32, #tpu.memory_space<vmem>>, vector<1x1x1x32xf32>,
    %c17_i32_246 = arith.constant 17 : i32
    %275 = arith.addi %239, %c17_i32_246 : i32
    %c0_247 = arith.constant 0 : index
    %276 = arith.index_cast %275 : i32 to index
    %c0_248 = arith.constant 0 : index
    %277 = vector.load %arg3[%c0_247, %276, %c0_248] : memref<1x64x32xf32, #tpu.memory_space<vmem>>, vector<1x1x32xf32>
    %278 = vector.shape_cast %277 : vector<1x1x32xf32> to vector<1x32xf32>
    %c0_249 = arith.constant 0 : index
    %c4_250 = arith.constant 4 : index
    %c5_251 = arith.constant 5 : index
    %c0_252 = arith.constant 0 : index
    %279 = vector.load %arg4[%c0_249, %c4_250, %c5_251, %c0_252] : memref<1x8x8x32xf32, #tpu.memory_space<vmem>>, vector<1x1x1x32xf32>
    %280 = vector.shape_cast %279 : vector<1x1x1x32xf32> to vector<1x32xf32>
    %281 = vector.shape_cast %278 : vector<1x32xf32> to vector<1x1x1x32xf32>
    tpu.vector_store %arg4[%c0_249, %c4_250, %c5_251, %c0_252], %281 {strides = array<i32>} : memref<1x8x8x32xf32, #tpu.memory_space<vmem>>, vector<1x1x1x32xf32>,
    %c5_i32_253 = arith.constant 5 : i32
    %282 = arith.addi %239, %c5_i32_253 : i32
    %c0_254 = arith.constant 0 : index
    %283 = arith.index_cast %282 : i32 to index
    %c0_255 = arith.constant 0 : index
    %284 = vector.load %arg3[%c0_254, %283, %c0_255] : memref<1x64x32xf32, #tpu.memory_space<vmem>>, vector<1x1x32xf32>
    %285 = vector.shape_cast %284 : vector<1x1x32xf32> to vector<1x32xf32>
    %c0_256 = arith.constant 0 : index
    %c4_257 = arith.constant 4 : index
    %c6_258 = arith.constant 6 : index
    %c0_259 = arith.constant 0 : index
    %286 = vector.load %arg4[%c0_256, %c4_257, %c6_258, %c0_259] : memref<1x8x8x32xf32, #tpu.memory_space<vmem>>, vector<1x1x1x32xf32>
    %287 = vector.shape_cast %286 : vector<1x1x1x32xf32> to vector<1x32xf32>
    %288 = vector.shape_cast %285 : vector<1x32xf32> to vector<1x1x1x32xf32>
    tpu.vector_store %arg4[%c0_256, %c4_257, %c6_258, %c0_259], %288 {strides = array<i32>} : memref<1x8x8x32xf32, #tpu.memory_space<vmem>>, vector<1x1x1x32xf32>,
    %c21_i32_260 = arith.constant 21 : i32
    %289 = arith.addi %239, %c21_i32_260 : i32
    %c0_261 = arith.constant 0 : index
    %290 = arith.index_cast %289 : i32 to index
    %c0_262 = arith.constant 0 : index
    %291 = vector.load %arg3[%c0_261, %290, %c0_262] : memref<1x64x32xf32, #tpu.memory_space<vmem>>, vector<1x1x32xf32>
    %292 = vector.shape_cast %291 : vector<1x1x32xf32> to vector<1x32xf32>
    %c0_263 = arith.constant 0 : index
    %c4_264 = arith.constant 4 : index
    %c7_265 = arith.constant 7 : index
    %c0_266 = arith.constant 0 : index
    %293 = vector.load %arg4[%c0_263, %c4_264, %c7_265, %c0_266] : memref<1x8x8x32xf32, #tpu.memory_space<vmem>>, vector<1x1x1x32xf32>
    %294 = vector.shape_cast %293 : vector<1x1x1x32xf32> to vector<1x32xf32>
    %295 = vector.shape_cast %292 : vector<1x32xf32> to vector<1x1x1x32xf32>
    tpu.vector_store %arg4[%c0_263, %c4_264, %c7_265, %c0_266], %295 {strides = array<i32>} : memref<1x8x8x32xf32, #tpu.memory_space<vmem>>, vector<1x1x1x32xf32>,
    %c5_i32_267 = arith.constant 5 : i32
    %296 = arith.addi %0, %c5_i32_267 : i32
    %297 = arith.index_cast %296 : i32 to index
    %298 = memref.load %arg2[%297] : memref<8xi32, #tpu.memory_space<smem>>
    %c0_i32_268 = arith.constant 0 : i32
    %299 = arith.addi %298, %c0_i32_268 : i32
    %c0_269 = arith.constant 0 : index
    %300 = arith.index_cast %299 : i32 to index
    %c0_270 = arith.constant 0 : index
    %301 = vector.load %arg3[%c0_269, %300, %c0_270] : memref<1x64x32xf32, #tpu.memory_space<vmem>>, vector<1x1x32xf32>
    %302 = vector.shape_cast %301 : vector<1x1x32xf32> to vector<1x32xf32>
    %c0_271 = arith.constant 0 : index
    %c5_272 = arith.constant 5 : index
    %c0_273 = arith.constant 0 : index
    %c0_274 = arith.constant 0 : index
    %303 = vector.load %arg4[%c0_271, %c5_272, %c0_273, %c0_274] : memref<1x8x8x32xf32, #tpu.memory_space<vmem>>, vector<1x1x1x32xf32>
    %304 = vector.shape_cast %303 : vector<1x1x1x32xf32> to vector<1x32xf32>
    %305 = vector.shape_cast %302 : vector<1x32xf32> to vector<1x1x1x32xf32>
    tpu.vector_store %arg4[%c0_271, %c5_272, %c0_273, %c0_274], %305 {strides = array<i32>} : memref<1x8x8x32xf32, #tpu.memory_space<vmem>>, vector<1x1x1x32xf32>,
    %c16_i32_275 = arith.constant 16 : i32
    %306 = arith.addi %298, %c16_i32_275 : i32
    %c0_276 = arith.constant 0 : index
    %307 = arith.index_cast %306 : i32 to index
    %c0_277 = arith.constant 0 : index
    %308 = vector.load %arg3[%c0_276, %307, %c0_277] : memref<1x64x32xf32, #tpu.memory_space<vmem>>, vector<1x1x32xf32>
    %309 = vector.shape_cast %308 : vector<1x1x32xf32> to vector<1x32xf32>
    %c0_278 = arith.constant 0 : index
    %c5_279 = arith.constant 5 : index
    %c1_280 = arith.constant 1 : index
    %c0_281 = arith.constant 0 : index
    %310 = vector.load %arg4[%c0_278, %c5_279, %c1_280, %c0_281] : memref<1x8x8x32xf32, #tpu.memory_space<vmem>>, vector<1x1x1x32xf32>
    %311 = vector.shape_cast %310 : vector<1x1x1x32xf32> to vector<1x32xf32>
    %312 = vector.shape_cast %309 : vector<1x32xf32> to vector<1x1x1x32xf32>
    tpu.vector_store %arg4[%c0_278, %c5_279, %c1_280, %c0_281], %312 {strides = array<i32>} : memref<1x8x8x32xf32, #tpu.memory_space<vmem>>, vector<1x1x1x32xf32>,
    %c4_i32_282 = arith.constant 4 : i32
    %313 = arith.addi %298, %c4_i32_282 : i32
    %c0_283 = arith.constant 0 : index
    %314 = arith.index_cast %313 : i32 to index
    %c0_284 = arith.constant 0 : index
    %315 = vector.load %arg3[%c0_283, %314, %c0_284] : memref<1x64x32xf32, #tpu.memory_space<vmem>>, vector<1x1x32xf32>
    %316 = vector.shape_cast %315 : vector<1x1x32xf32> to vector<1x32xf32>
    %c0_285 = arith.constant 0 : index
    %c5_286 = arith.constant 5 : index
    %c2_287 = arith.constant 2 : index
    %c0_288 = arith.constant 0 : index
    %317 = vector.load %arg4[%c0_285, %c5_286, %c2_287, %c0_288] : memref<1x8x8x32xf32, #tpu.memory_space<vmem>>, vector<1x1x1x32xf32>
    %318 = vector.shape_cast %317 : vector<1x1x1x32xf32> to vector<1x32xf32>
    %319 = vector.shape_cast %316 : vector<1x32xf32> to vector<1x1x1x32xf32>
    tpu.vector_store %arg4[%c0_285, %c5_286, %c2_287, %c0_288], %319 {strides = array<i32>} : memref<1x8x8x32xf32, #tpu.memory_space<vmem>>, vector<1x1x1x32xf32>,
    %c20_i32_289 = arith.constant 20 : i32
    %320 = arith.addi %298, %c20_i32_289 : i32
    %c0_290 = arith.constant 0 : index
    %321 = arith.index_cast %320 : i32 to index
    %c0_291 = arith.constant 0 : index
    %322 = vector.load %arg3[%c0_290, %321, %c0_291] : memref<1x64x32xf32, #tpu.memory_space<vmem>>, vector<1x1x32xf32>
    %323 = vector.shape_cast %322 : vector<1x1x32xf32> to vector<1x32xf32>
    %c0_292 = arith.constant 0 : index
    %c5_293 = arith.constant 5 : index
    %c3_294 = arith.constant 3 : index
    %c0_295 = arith.constant 0 : index
    %324 = vector.load %arg4[%c0_292, %c5_293, %c3_294, %c0_295] : memref<1x8x8x32xf32, #tpu.memory_space<vmem>>, vector<1x1x1x32xf32>
    %325 = vector.shape_cast %324 : vector<1x1x1x32xf32> to vector<1x32xf32>
    %326 = vector.shape_cast %323 : vector<1x32xf32> to vector<1x1x1x32xf32>
    tpu.vector_store %arg4[%c0_292, %c5_293, %c3_294, %c0_295], %326 {strides = array<i32>} : memref<1x8x8x32xf32, #tpu.memory_space<vmem>>, vector<1x1x1x32xf32>,
    %c1_i32_296 = arith.constant 1 : i32
    %327 = arith.addi %298, %c1_i32_296 : i32
    %c0_297 = arith.constant 0 : index
    %328 = arith.index_cast %327 : i32 to index
    %c0_298 = arith.constant 0 : index
    %329 = vector.load %arg3[%c0_297, %328, %c0_298] : memref<1x64x32xf32, #tpu.memory_space<vmem>>, vector<1x1x32xf32>
    %330 = vector.shape_cast %329 : vector<1x1x32xf32> to vector<1x32xf32>
    %c0_299 = arith.constant 0 : index
    %c5_300 = arith.constant 5 : index
    %c4_301 = arith.constant 4 : index
    %c0_302 = arith.constant 0 : index
    %331 = vector.load %arg4[%c0_299, %c5_300, %c4_301, %c0_302] : memref<1x8x8x32xf32, #tpu.memory_space<vmem>>, vector<1x1x1x32xf32>
    %332 = vector.shape_cast %331 : vector<1x1x1x32xf32> to vector<1x32xf32>
    %333 = vector.shape_cast %330 : vector<1x32xf32> to vector<1x1x1x32xf32>
    tpu.vector_store %arg4[%c0_299, %c5_300, %c4_301, %c0_302], %333 {strides = array<i32>} : memref<1x8x8x32xf32, #tpu.memory_space<vmem>>, vector<1x1x1x32xf32>,
    %c17_i32_303 = arith.constant 17 : i32
    %334 = arith.addi %298, %c17_i32_303 : i32
    %c0_304 = arith.constant 0 : index
    %335 = arith.index_cast %334 : i32 to index
    %c0_305 = arith.constant 0 : index
    %336 = vector.load %arg3[%c0_304, %335, %c0_305] : memref<1x64x32xf32, #tpu.memory_space<vmem>>, vector<1x1x32xf32>
    %337 = vector.shape_cast %336 : vector<1x1x32xf32> to vector<1x32xf32>
    %c0_306 = arith.constant 0 : index
    %c5_307 = arith.constant 5 : index
    %c5_308 = arith.constant 5 : index
    %c0_309 = arith.constant 0 : index
    %338 = vector.load %arg4[%c0_306, %c5_307, %c5_308, %c0_309] : memref<1x8x8x32xf32, #tpu.memory_space<vmem>>, vector<1x1x1x32xf32>
    %339 = vector.shape_cast %338 : vector<1x1x1x32xf32> to vector<1x32xf32>
    %340 = vector.shape_cast %337 : vector<1x32xf32> to vector<1x1x1x32xf32>
    tpu.vector_store %arg4[%c0_306, %c5_307, %c5_308, %c0_309], %340 {strides = array<i32>} : memref<1x8x8x32xf32, #tpu.memory_space<vmem>>, vector<1x1x1x32xf32>,
    %c5_i32_310 = arith.constant 5 : i32
    %341 = arith.addi %298, %c5_i32_310 : i32
    %c0_311 = arith.constant 0 : index
    %342 = arith.index_cast %341 : i32 to index
    %c0_312 = arith.constant 0 : index
    %343 = vector.load %arg3[%c0_311, %342, %c0_312] : memref<1x64x32xf32, #tpu.memory_space<vmem>>, vector<1x1x32xf32>
    %344 = vector.shape_cast %343 : vector<1x1x32xf32> to vector<1x32xf32>
    %c0_313 = arith.constant 0 : index
    %c5_314 = arith.constant 5 : index
    %c6_315 = arith.constant 6 : index
    %c0_316 = arith.constant 0 : index
    %345 = vector.load %arg4[%c0_313, %c5_314, %c6_315, %c0_316] : memref<1x8x8x32xf32, #tpu.memory_space<vmem>>, vector<1x1x1x32xf32>
    %346 = vector.shape_cast %345 : vector<1x1x1x32xf32> to vector<1x32xf32>
    %347 = vector.shape_cast %344 : vector<1x32xf32> to vector<1x1x1x32xf32>
    tpu.vector_store %arg4[%c0_313, %c5_314, %c6_315, %c0_316], %347 {strides = array<i32>} : memref<1x8x8x32xf32, #tpu.memory_space<vmem>>, vector<1x1x1x32xf32>,
    %c21_i32_317 = arith.constant 21 : i32
    %348 = arith.addi %298, %c21_i32_317 : i32
    %c0_318 = arith.constant 0 : index
    %349 = arith.index_cast %348 : i32 to index
    %c0_319 = arith.constant 0 : index
    %350 = vector.load %arg3[%c0_318, %349, %c0_319] : memref<1x64x32xf32, #tpu.memory_space<vmem>>, vector<1x1x32xf32>
    %351 = vector.shape_cast %350 : vector<1x1x32xf32> to vector<1x32xf32>
    %c0_320 = arith.constant 0 : index
    %c5_321 = arith.constant 5 : index
    %c7_322 = arith.constant 7 : index
    %c0_323 = arith.constant 0 : index
    %352 = vector.load %arg4[%c0_320, %c5_321, %c7_322, %c0_323] : memref<1x8x8x32xf32, #tpu.memory_space<vmem>>, vector<1x1x1x32xf32>
    %353 = vector.shape_cast %352 : vector<1x1x1x32xf32> to vector<1x32xf32>
    %354 = vector.shape_cast %351 : vector<1x32xf32> to vector<1x1x1x32xf32>
    tpu.vector_store %arg4[%c0_320, %c5_321, %c7_322, %c0_323], %354 {strides = array<i32>} : memref<1x8x8x32xf32, #tpu.memory_space<vmem>>, vector<1x1x1x32xf32>,
    %c6_i32 = arith.constant 6 : i32
    %355 = arith.addi %0, %c6_i32 : i32
    %356 = arith.index_cast %355 : i32 to index
    %357 = memref.load %arg2[%356] : memref<8xi32, #tpu.memory_space<smem>>
    %c0_i32_324 = arith.constant 0 : i32
    %358 = arith.addi %357, %c0_i32_324 : i32
    %c0_325 = arith.constant 0 : index
    %359 = arith.index_cast %358 : i32 to index
    %c0_326 = arith.constant 0 : index
    %360 = vector.load %arg3[%c0_325, %359, %c0_326] : memref<1x64x32xf32, #tpu.memory_space<vmem>>, vector<1x1x32xf32>
    %361 = vector.shape_cast %360 : vector<1x1x32xf32> to vector<1x32xf32>
    %c0_327 = arith.constant 0 : index
    %c6_328 = arith.constant 6 : index
    %c0_329 = arith.constant 0 : index
    %c0_330 = arith.constant 0 : index
    %362 = vector.load %arg4[%c0_327, %c6_328, %c0_329, %c0_330] : memref<1x8x8x32xf32, #tpu.memory_space<vmem>>, vector<1x1x1x32xf32>
    %363 = vector.shape_cast %362 : vector<1x1x1x32xf32> to vector<1x32xf32>
    %364 = vector.shape_cast %361 : vector<1x32xf32> to vector<1x1x1x32xf32>
    tpu.vector_store %arg4[%c0_327, %c6_328, %c0_329, %c0_330], %364 {strides = array<i32>} : memref<1x8x8x32xf32, #tpu.memory_space<vmem>>, vector<1x1x1x32xf32>,
    %c16_i32_331 = arith.constant 16 : i32
    %365 = arith.addi %357, %c16_i32_331 : i32
    %c0_332 = arith.constant 0 : index
    %366 = arith.index_cast %365 : i32 to index
    %c0_333 = arith.constant 0 : index
    %367 = vector.load %arg3[%c0_332, %366, %c0_333] : memref<1x64x32xf32, #tpu.memory_space<vmem>>, vector<1x1x32xf32>
    %368 = vector.shape_cast %367 : vector<1x1x32xf32> to vector<1x32xf32>
    %c0_334 = arith.constant 0 : index
    %c6_335 = arith.constant 6 : index
    %c1_336 = arith.constant 1 : index
    %c0_337 = arith.constant 0 : index
    %369 = vector.load %arg4[%c0_334, %c6_335, %c1_336, %c0_337] : memref<1x8x8x32xf32, #tpu.memory_space<vmem>>, vector<1x1x1x32xf32>
    %370 = vector.shape_cast %369 : vector<1x1x1x32xf32> to vector<1x32xf32>
    %371 = vector.shape_cast %368 : vector<1x32xf32> to vector<1x1x1x32xf32>
    tpu.vector_store %arg4[%c0_334, %c6_335, %c1_336, %c0_337], %371 {strides = array<i32>} : memref<1x8x8x32xf32, #tpu.memory_space<vmem>>, vector<1x1x1x32xf32>,
    %c4_i32_338 = arith.constant 4 : i32
    %372 = arith.addi %357, %c4_i32_338 : i32
    %c0_339 = arith.constant 0 : index
    %373 = arith.index_cast %372 : i32 to index
    %c0_340 = arith.constant 0 : index
    %374 = vector.load %arg3[%c0_339, %373, %c0_340] : memref<1x64x32xf32, #tpu.memory_space<vmem>>, vector<1x1x32xf32>
    %375 = vector.shape_cast %374 : vector<1x1x32xf32> to vector<1x32xf32>
    %c0_341 = arith.constant 0 : index
    %c6_342 = arith.constant 6 : index
    %c2_343 = arith.constant 2 : index
    %c0_344 = arith.constant 0 : index
    %376 = vector.load %arg4[%c0_341, %c6_342, %c2_343, %c0_344] : memref<1x8x8x32xf32, #tpu.memory_space<vmem>>, vector<1x1x1x32xf32>
    %377 = vector.shape_cast %376 : vector<1x1x1x32xf32> to vector<1x32xf32>
    %378 = vector.shape_cast %375 : vector<1x32xf32> to vector<1x1x1x32xf32>
    tpu.vector_store %arg4[%c0_341, %c6_342, %c2_343, %c0_344], %378 {strides = array<i32>} : memref<1x8x8x32xf32, #tpu.memory_space<vmem>>, vector<1x1x1x32xf32>,
    %c20_i32_345 = arith.constant 20 : i32
    %379 = arith.addi %357, %c20_i32_345 : i32
    %c0_346 = arith.constant 0 : index
    %380 = arith.index_cast %379 : i32 to index
    %c0_347 = arith.constant 0 : index
    %381 = vector.load %arg3[%c0_346, %380, %c0_347] : memref<1x64x32xf32, #tpu.memory_space<vmem>>, vector<1x1x32xf32>
    %382 = vector.shape_cast %381 : vector<1x1x32xf32> to vector<1x32xf32>
    %c0_348 = arith.constant 0 : index
    %c6_349 = arith.constant 6 : index
    %c3_350 = arith.constant 3 : index
    %c0_351 = arith.constant 0 : index
    %383 = vector.load %arg4[%c0_348, %c6_349, %c3_350, %c0_351] : memref<1x8x8x32xf32, #tpu.memory_space<vmem>>, vector<1x1x1x32xf32>
    %384 = vector.shape_cast %383 : vector<1x1x1x32xf32> to vector<1x32xf32>
    %385 = vector.shape_cast %382 : vector<1x32xf32> to vector<1x1x1x32xf32>
    tpu.vector_store %arg4[%c0_348, %c6_349, %c3_350, %c0_351], %385 {strides = array<i32>} : memref<1x8x8x32xf32, #tpu.memory_space<vmem>>, vector<1x1x1x32xf32>,
    %c1_i32_352 = arith.constant 1 : i32
    %386 = arith.addi %357, %c1_i32_352 : i32
    %c0_353 = arith.constant 0 : index
    %387 = arith.index_cast %386 : i32 to index
    %c0_354 = arith.constant 0 : index
    %388 = vector.load %arg3[%c0_353, %387, %c0_354] : memref<1x64x32xf32, #tpu.memory_space<vmem>>, vector<1x1x32xf32>
    %389 = vector.shape_cast %388 : vector<1x1x32xf32> to vector<1x32xf32>
    %c0_355 = arith.constant 0 : index
    %c6_356 = arith.constant 6 : index
    %c4_357 = arith.constant 4 : index
    %c0_358 = arith.constant 0 : index
    %390 = vector.load %arg4[%c0_355, %c6_356, %c4_357, %c0_358] : memref<1x8x8x32xf32, #tpu.memory_space<vmem>>, vector<1x1x1x32xf32>
    %391 = vector.shape_cast %390 : vector<1x1x1x32xf32> to vector<1x32xf32>
    %392 = vector.shape_cast %389 : vector<1x32xf32> to vector<1x1x1x32xf32>
    tpu.vector_store %arg4[%c0_355, %c6_356, %c4_357, %c0_358], %392 {strides = array<i32>} : memref<1x8x8x32xf32, #tpu.memory_space<vmem>>, vector<1x1x1x32xf32>,
    %c17_i32_359 = arith.constant 17 : i32
    %393 = arith.addi %357, %c17_i32_359 : i32
    %c0_360 = arith.constant 0 : index
    %394 = arith.index_cast %393 : i32 to index
    %c0_361 = arith.constant 0 : index
    %395 = vector.load %arg3[%c0_360, %394, %c0_361] : memref<1x64x32xf32, #tpu.memory_space<vmem>>, vector<1x1x32xf32>
    %396 = vector.shape_cast %395 : vector<1x1x32xf32> to vector<1x32xf32>
    %c0_362 = arith.constant 0 : index
    %c6_363 = arith.constant 6 : index
    %c5_364 = arith.constant 5 : index
    %c0_365 = arith.constant 0 : index
    %397 = vector.load %arg4[%c0_362, %c6_363, %c5_364, %c0_365] : memref<1x8x8x32xf32, #tpu.memory_space<vmem>>, vector<1x1x1x32xf32>
    %398 = vector.shape_cast %397 : vector<1x1x1x32xf32> to vector<1x32xf32>
    %399 = vector.shape_cast %396 : vector<1x32xf32> to vector<1x1x1x32xf32>
    tpu.vector_store %arg4[%c0_362, %c6_363, %c5_364, %c0_365], %399 {strides = array<i32>} : memref<1x8x8x32xf32, #tpu.memory_space<vmem>>, vector<1x1x1x32xf32>,
    %c5_i32_366 = arith.constant 5 : i32
    %400 = arith.addi %357, %c5_i32_366 : i32
    %c0_367 = arith.constant 0 : index
    %401 = arith.index_cast %400 : i32 to index
    %c0_368 = arith.constant 0 : index
    %402 = vector.load %arg3[%c0_367, %401, %c0_368] : memref<1x64x32xf32, #tpu.memory_space<vmem>>, vector<1x1x32xf32>
    %403 = vector.shape_cast %402 : vector<1x1x32xf32> to vector<1x32xf32>
    %c0_369 = arith.constant 0 : index
    %c6_370 = arith.constant 6 : index
    %c6_371 = arith.constant 6 : index
    %c0_372 = arith.constant 0 : index
    %404 = vector.load %arg4[%c0_369, %c6_370, %c6_371, %c0_372] : memref<1x8x8x32xf32, #tpu.memory_space<vmem>>, vector<1x1x1x32xf32>
    %405 = vector.shape_cast %404 : vector<1x1x1x32xf32> to vector<1x32xf32>
    %406 = vector.shape_cast %403 : vector<1x32xf32> to vector<1x1x1x32xf32>
    tpu.vector_store %arg4[%c0_369, %c6_370, %c6_371, %c0_372], %406 {strides = array<i32>} : memref<1x8x8x32xf32, #tpu.memory_space<vmem>>, vector<1x1x1x32xf32>,
    %c21_i32_373 = arith.constant 21 : i32
    %407 = arith.addi %357, %c21_i32_373 : i32
    %c0_374 = arith.constant 0 : index
    %408 = arith.index_cast %407 : i32 to index
    %c0_375 = arith.constant 0 : index
    %409 = vector.load %arg3[%c0_374, %408, %c0_375] : memref<1x64x32xf32, #tpu.memory_space<vmem>>, vector<1x1x32xf32>
    %410 = vector.shape_cast %409 : vector<1x1x32xf32> to vector<1x32xf32>
    %c0_376 = arith.constant 0 : index
    %c6_377 = arith.constant 6 : index
    %c7_378 = arith.constant 7 : index
    %c0_379 = arith.constant 0 : index
    %411 = vector.load %arg4[%c0_376, %c6_377, %c7_378, %c0_379] : memref<1x8x8x32xf32, #tpu.memory_space<vmem>>, vector<1x1x1x32xf32>
    %412 = vector.shape_cast %411 : vector<1x1x1x32xf32> to vector<1x32xf32>
    %413 = vector.shape_cast %410 : vector<1x32xf32> to vector<1x1x1x32xf32>
    tpu.vector_store %arg4[%c0_376, %c6_377, %c7_378, %c0_379], %413 {strides = array<i32>} : memref<1x8x8x32xf32, #tpu.memory_space<vmem>>, vector<1x1x1x32xf32>,
    %c7_i32 = arith.constant 7 : i32
    %414 = arith.addi %0, %c7_i32 : i32
    %415 = arith.index_cast %414 : i32 to index
    %416 = memref.load %arg2[%415] : memref<8xi32, #tpu.memory_space<smem>>
    %c0_i32_380 = arith.constant 0 : i32
    %417 = arith.addi %416, %c0_i32_380 : i32
    %c0_381 = arith.constant 0 : index
    %418 = arith.index_cast %417 : i32 to index
    %c0_382 = arith.constant 0 : index
    %419 = vector.load %arg3[%c0_381, %418, %c0_382] : memref<1x64x32xf32, #tpu.memory_space<vmem>>, vector<1x1x32xf32>
    %420 = vector.shape_cast %419 : vector<1x1x32xf32> to vector<1x32xf32>
    %c0_383 = arith.constant 0 : index
    %c7_384 = arith.constant 7 : index
    %c0_385 = arith.constant 0 : index
    %c0_386 = arith.constant 0 : index
    %421 = vector.load %arg4[%c0_383, %c7_384, %c0_385, %c0_386] : memref<1x8x8x32xf32, #tpu.memory_space<vmem>>, vector<1x1x1x32xf32>
    %422 = vector.shape_cast %421 : vector<1x1x1x32xf32> to vector<1x32xf32>
    %423 = vector.shape_cast %420 : vector<1x32xf32> to vector<1x1x1x32xf32>
    tpu.vector_store %arg4[%c0_383, %c7_384, %c0_385, %c0_386], %423 {strides = array<i32>} : memref<1x8x8x32xf32, #tpu.memory_space<vmem>>, vector<1x1x1x32xf32>,
    %c16_i32_387 = arith.constant 16 : i32
    %424 = arith.addi %416, %c16_i32_387 : i32
    %c0_388 = arith.constant 0 : index
    %425 = arith.index_cast %424 : i32 to index
    %c0_389 = arith.constant 0 : index
    %426 = vector.load %arg3[%c0_388, %425, %c0_389] : memref<1x64x32xf32, #tpu.memory_space<vmem>>, vector<1x1x32xf32>
    %427 = vector.shape_cast %426 : vector<1x1x32xf32> to vector<1x32xf32>
    %c0_390 = arith.constant 0 : index
    %c7_391 = arith.constant 7 : index
    %c1_392 = arith.constant 1 : index
    %c0_393 = arith.constant 0 : index
    %428 = vector.load %arg4[%c0_390, %c7_391, %c1_392, %c0_393] : memref<1x8x8x32xf32, #tpu.memory_space<vmem>>, vector<1x1x1x32xf32>
    %429 = vector.shape_cast %428 : vector<1x1x1x32xf32> to vector<1x32xf32>
    %430 = vector.shape_cast %427 : vector<1x32xf32> to vector<1x1x1x32xf32>
    tpu.vector_store %arg4[%c0_390, %c7_391, %c1_392, %c0_393], %430 {strides = array<i32>} : memref<1x8x8x32xf32, #tpu.memory_space<vmem>>, vector<1x1x1x32xf32>,
    %c4_i32_394 = arith.constant 4 : i32
    %431 = arith.addi %416, %c4_i32_394 : i32
    %c0_395 = arith.constant 0 : index
    %432 = arith.index_cast %431 : i32 to index
    %c0_396 = arith.constant 0 : index
    %433 = vector.load %arg3[%c0_395, %432, %c0_396] : memref<1x64x32xf32, #tpu.memory_space<vmem>>, vector<1x1x32xf32>
    %434 = vector.shape_cast %433 : vector<1x1x32xf32> to vector<1x32xf32>
    %c0_397 = arith.constant 0 : index
    %c7_398 = arith.constant 7 : index
    %c2_399 = arith.constant 2 : index
    %c0_400 = arith.constant 0 : index
    %435 = vector.load %arg4[%c0_397, %c7_398, %c2_399, %c0_400] : memref<1x8x8x32xf32, #tpu.memory_space<vmem>>, vector<1x1x1x32xf32>
    %436 = vector.shape_cast %435 : vector<1x1x1x32xf32> to vector<1x32xf32>
    %437 = vector.shape_cast %434 : vector<1x32xf32> to vector<1x1x1x32xf32>
    tpu.vector_store %arg4[%c0_397, %c7_398, %c2_399, %c0_400], %437 {strides = array<i32>} : memref<1x8x8x32xf32, #tpu.memory_space<vmem>>, vector<1x1x1x32xf32>,
    %c20_i32_401 = arith.constant 20 : i32
    %438 = arith.addi %416, %c20_i32_401 : i32
    %c0_402 = arith.constant 0 : index
    %439 = arith.index_cast %438 : i32 to index
    %c0_403 = arith.constant 0 : index
    %440 = vector.load %arg3[%c0_402, %439, %c0_403] : memref<1x64x32xf32, #tpu.memory_space<vmem>>, vector<1x1x32xf32>
    %441 = vector.shape_cast %440 : vector<1x1x32xf32> to vector<1x32xf32>
    %c0_404 = arith.constant 0 : index
    %c7_405 = arith.constant 7 : index
    %c3_406 = arith.constant 3 : index
    %c0_407 = arith.constant 0 : index
    %442 = vector.load %arg4[%c0_404, %c7_405, %c3_406, %c0_407] : memref<1x8x8x32xf32, #tpu.memory_space<vmem>>, vector<1x1x1x32xf32>
    %443 = vector.shape_cast %442 : vector<1x1x1x32xf32> to vector<1x32xf32>
    %444 = vector.shape_cast %441 : vector<1x32xf32> to vector<1x1x1x32xf32>
    tpu.vector_store %arg4[%c0_404, %c7_405, %c3_406, %c0_407], %444 {strides = array<i32>} : memref<1x8x8x32xf32, #tpu.memory_space<vmem>>, vector<1x1x1x32xf32>,
    %c1_i32_408 = arith.constant 1 : i32
    %445 = arith.addi %416, %c1_i32_408 : i32
    %c0_409 = arith.constant 0 : index
    %446 = arith.index_cast %445 : i32 to index
    %c0_410 = arith.constant 0 : index
    %447 = vector.load %arg3[%c0_409, %446, %c0_410] : memref<1x64x32xf32, #tpu.memory_space<vmem>>, vector<1x1x32xf32>
    %448 = vector.shape_cast %447 : vector<1x1x32xf32> to vector<1x32xf32>
    %c0_411 = arith.constant 0 : index
    %c7_412 = arith.constant 7 : index
    %c4_413 = arith.constant 4 : index
    %c0_414 = arith.constant 0 : index
    %449 = vector.load %arg4[%c0_411, %c7_412, %c4_413, %c0_414] : memref<1x8x8x32xf32, #tpu.memory_space<vmem>>, vector<1x1x1x32xf32>
    %450 = vector.shape_cast %449 : vector<1x1x1x32xf32> to vector<1x32xf32>
    %451 = vector.shape_cast %448 : vector<1x32xf32> to vector<1x1x1x32xf32>
    tpu.vector_store %arg4[%c0_411, %c7_412, %c4_413, %c0_414], %451 {strides = array<i32>} : memref<1x8x8x32xf32, #tpu.memory_space<vmem>>, vector<1x1x1x32xf32>,
    %c17_i32_415 = arith.constant 17 : i32
    %452 = arith.addi %416, %c17_i32_415 : i32
    %c0_416 = arith.constant 0 : index
    %453 = arith.index_cast %452 : i32 to index
    %c0_417 = arith.constant 0 : index
    %454 = vector.load %arg3[%c0_416, %453, %c0_417] : memref<1x64x32xf32, #tpu.memory_space<vmem>>, vector<1x1x32xf32>
    %455 = vector.shape_cast %454 : vector<1x1x32xf32> to vector<1x32xf32>
    %c0_418 = arith.constant 0 : index
    %c7_419 = arith.constant 7 : index
    %c5_420 = arith.constant 5 : index
    %c0_421 = arith.constant 0 : index
    %456 = vector.load %arg4[%c0_418, %c7_419, %c5_420, %c0_421] : memref<1x8x8x32xf32, #tpu.memory_space<vmem>>, vector<1x1x1x32xf32>
    %457 = vector.shape_cast %456 : vector<1x1x1x32xf32> to vector<1x32xf32>
    %458 = vector.shape_cast %455 : vector<1x32xf32> to vector<1x1x1x32xf32>
    tpu.vector_store %arg4[%c0_418, %c7_419, %c5_420, %c0_421], %458 {strides = array<i32>} : memref<1x8x8x32xf32, #tpu.memory_space<vmem>>, vector<1x1x1x32xf32>,
    %c5_i32_422 = arith.constant 5 : i32
    %459 = arith.addi %416, %c5_i32_422 : i32
    %c0_423 = arith.constant 0 : index
    %460 = arith.index_cast %459 : i32 to index
    %c0_424 = arith.constant 0 : index
    %461 = vector.load %arg3[%c0_423, %460, %c0_424] : memref<1x64x32xf32, #tpu.memory_space<vmem>>, vector<1x1x32xf32>
    %462 = vector.shape_cast %461 : vector<1x1x32xf32> to vector<1x32xf32>
    %c0_425 = arith.constant 0 : index
    %c7_426 = arith.constant 7 : index
    %c6_427 = arith.constant 6 : index
    %c0_428 = arith.constant 0 : index
    %463 = vector.load %arg4[%c0_425, %c7_426, %c6_427, %c0_428] : memref<1x8x8x32xf32, #tpu.memory_space<vmem>>, vector<1x1x1x32xf32>
    %464 = vector.shape_cast %463 : vector<1x1x1x32xf32> to vector<1x32xf32>
    %465 = vector.shape_cast %462 : vector<1x32xf32> to vector<1x1x1x32xf32>
    tpu.vector_store %arg4[%c0_425, %c7_426, %c6_427, %c0_428], %465 {strides = array<i32>} : memref<1x8x8x32xf32, #tpu.memory_space<vmem>>, vector<1x1x1x32xf32>,
    %c21_i32_429 = arith.constant 21 : i32
    %466 = arith.addi %416, %c21_i32_429 : i32
    %c0_430 = arith.constant 0 : index
    %467 = arith.index_cast %466 : i32 to index
    %c0_431 = arith.constant 0 : index
    %468 = vector.load %arg3[%c0_430, %467, %c0_431] : memref<1x64x32xf32, #tpu.memory_space<vmem>>, vector<1x1x32xf32>
    %469 = vector.shape_cast %468 : vector<1x1x32xf32> to vector<1x32xf32>
    %c0_432 = arith.constant 0 : index
    %c7_433 = arith.constant 7 : index
    %c7_434 = arith.constant 7 : index
    %c0_435 = arith.constant 0 : index
    %470 = vector.load %arg4[%c0_432, %c7_433, %c7_434, %c0_435] : memref<1x8x8x32xf32, #tpu.memory_space<vmem>>, vector<1x1x1x32xf32>
    %471 = vector.shape_cast %470 : vector<1x1x1x32xf32> to vector<1x32xf32>
    %472 = vector.shape_cast %469 : vector<1x32xf32> to vector<1x1x1x32xf32>
    tpu.vector_store %arg4[%c0_432, %c7_433, %c7_434, %c0_435], %472 {strides = array<i32>} : memref<1x8x8x32xf32, #tpu.memory_space<vmem>>, vector<1x1x1x32xf32>,
    return
  }
  func.func @transform_0(%arg0: i32, %arg1: i32, %arg2: memref<8xi32, #tpu.memory_space<smem>>) -> (i32, i32, i32) {
    %c0_i32 = arith.constant 0 : i32
    %c0_i32_0 = arith.constant 0 : i32
    %c0_i32_1 = arith.constant 0 : i32
    return %arg0, %c0_i32, %c0_i32_0 : i32, i32, i32
  }
  func.func @transform_1(%arg0: i32, %arg1: i32, %arg2: memref<8xi32, #tpu.memory_space<smem>>) -> (i32, i32, i32, i32) {
    %c0_i32 = arith.constant 0 : i32
    %c0_i32_0 = arith.constant 0 : i32
    %c0_i32_1 = arith.constant 0 : i32
    return %arg0, %arg1, %c0_i32, %c0_i32_0 : i32, i32, i32, i32
  }
}

</mosaic_0001>

<llo_original>
// kernel: tpu_custom_call.1
$region0: #{tpu_custom_call.1}
  #allocation0 [shape = 'u32[]', space=smem, size = 0x4, offset = 0x4, fixed_abs, tag = 'smem constant byte address 0x4 - core index']
  #allocation1 [shape = 'u32[144,128]{1,0:T(1,128)}', space=vmem, size = 0x12000, scoped, tag = 'internal scratch']
  #allocation2 [shape = 's32[1]{0}', space=sflag, size = 0x4, scoped, tag = 'scoped memory for tpu_custom_call.1']
  #allocation3 [shape = 'u8[512]{0}', space=smem, size = 0x200, scoped, tag = 'prefetched SMEM operand 0']
  %s0 = inlined_call_operand.vmem [shape: s32[8], index: 0, kind: input, shape index: {}]
  %s1 = inlined_call_operand.vmem [shape: f32[2,64,32], index: 1, kind: input, shape index: {}]
  %s2 = inlined_call_operand.hbm [shape: f32[2,8,8,32], index: 2, kind: output, shape index: {}]
  %s3 = sld [smem:[#allocation0]]
  $region37: #{tpu_custom_call.1} parent=0
    _
  %s5 = ssub.s32 1, %s3
  %s6 = scalar_select 0, %s5, %s3
  %s7 = sshll.u32 %s0, 4
  %s8 = int_to_ptr.vmem [resolvable:$true] %s7
  %10 = dma.vmem_to_smem %s8, 16, [#allocation3], [#allocation2]
  %11 = dma.done [#allocation2], 16
  %12 = sfence
  $region1: #{tpu_custom_call.1} parent=0
    #allocation4 [shape = 'u8[65536]{0}', space=vmem, size = 0x10000, scoped, tag = 'output window, operand 0']
    #allocation5 [shape = 's32[2]{0}', space=sflag, size = 0x8, scoped, tag = 'scoped memory for tpu_custom_call.1']
    %13 = vsyncpa [#allocation5], 0
    %s14 = scalar_lea.sflag [#allocation5], 1
    %15 = vsyncpa %s14, 0
    loop: start=0, step=1, limit=4
    $region2: #{tpu_custom_call.1} parent=1 // loop_pre_header
      _
    $region3: #{tpu_custom_call.1} parent=1 // loop_header
      %s17 = sphi 0, %s21
      %p18 = scmp.ge.s32.totalorder %s17, 4
      %s24 = sphi 0, %s36
      %s25 = sphi 0, %s32
      %s26 = sphi 0, %s24
      %s27 = sphi 0, %s25
      %s28 = sphi 0, %s26
      %s29 = sphi 0, %s27
      %s39 = sphi 0, %s41
      %s42 = sphi 0, %s39
      %s43 = sphi 0, %s42
      %s59 = sphi 0, %s43
      %s67 = sphi 0, %s69
      %s70 = sphi 0, %s67
      %s71 = sphi 0, %s70
      %s87 = sphi 0, %s71
    $region4: #{tpu_custom_call.1} parent=1 // loop_header_branch
      %20 = sbr.rel (%p18) target = $region8
    $region5: #{tpu_custom_call.1} parent=1 // loop_body
      %s22 = ssub.s32 %s17, 1
      %s23 = ssub.s32 %s17, 2
      %s30 = sadd.s32 1, %s25
      %p31 = scmp.ge.s32.totalorder %s30, 1
      %s32 = scalar_select %p31, 0, %s30
      %s33 = sadd.s32 1, %s24
      %s34 = scalar_select %p31, %s33, %s24
      %p35 = scmp.ge.s32.totalorder %s34, 2
      %s36 = scalar_select %p35, 0, %s34
      %s37 = ssub.s32 %s24, %s36
      %p38 = scmp.eq.s32.totalorder %s37, 0
      %s40 = sadd.s32 %s39, 1
      %s41 = scalar_select %p38, %s39, %s40
      %p44 = pneg %p38
      %p45 = scmp.eq.s32.totalorder %s17, 1
      %p46 = por %p44, %p45
      %p47 = scmp.ne.s32.totalorder %s39, %s42
      %p48 = scmp.eq.s32.totalorder %s17, 0
      %p49 = por %p47, %p48
      %p50 = scmp.ne.s32.totalorder %s39, %s42
      %p51 = scmp.eq.s32.totalorder %s22, 1
      %p52 = por %p50, %p51
      %p53 = scmp.ne.s32.totalorder %s42, %s43
      %p54 = scmp.eq.s32.totalorder %s22, 0
      %p55 = por %p53, %p54
      %p56 = scmp.ne.s32.totalorder %s42, %s43
      %p57 = scmp.eq.s32.totalorder %s23, 1
      %p58 = por %p56, %p57
      %p60 = scmp.ne.s32.totalorder %s43, %s59
      %p61 = scmp.eq.s32.totalorder %s23, 0
      %p62 = por %p60, %p61
      %s63 = ssub.s32 %s24, %s36
      %s64 = ssub.s32 %s25, %s32
      %s65 = sor.u32 %s63, %s64
      %p66 = scmp.eq.s32.totalorder %s65, 0
      %s68 = sadd.s32 %s67, 1
      %s69 = scalar_select %p66, %s67, %s68
      %p72 = pneg %p66
      %p73 = scmp.eq.s32.totalorder %s17, 1
      %p74 = por %p72, %p73
      %p75 = scmp.ne.s32.totalorder %s67, %s70
      %p76 = scmp.eq.s32.totalorder %s17, 0
      %p77 = por %p75, %p76
      %p78 = scmp.ne.s32.totalorder %s67, %s70
      %p79 = scmp.eq.s32.totalorder %s22, 1
      %p80 = por %p78, %p79
      %p81 = scmp.ne.s32.totalorder %s70, %s71
      %p82 = scmp.eq.s32.totalorder %s22, 0
      %p83 = por %p81, %p82
      %p84 = scmp.ne.s32.totalorder %s70, %s71
      %p85 = scmp.eq.s32.totalorder %s23, 1
      %p86 = por %p84, %p85
      %p88 = scmp.ne.s32.totalorder %s71, %s87
      %p89 = scmp.eq.s32.totalorder %s23, 0
      %p90 = por %p88, %p89
      %p91 = scmp.le.s32.totalorder 1, %s17
      %p92 = scmp.lt.s32.totalorder %s17, 3
      %p93 = pnand %p91, %p92
      %p94 = pneg %p93
      // Predicated region
      $region9: #{tpu_custom_call.1} parent=5 // pred_check
        _
      $region10: #{tpu_custom_call.1} parent=5 // pred_check_branch
        %96 = sbr.rel (%p93) target = $region12
      $region11: #{tpu_custom_call.1} parent=5 // pred_region
        %s97 = ssub.s32 %s17, 1
      $region12: #{tpu_custom_call.1} parent=5 // pred_fallthru
        _
      %p98 = scmp.lt.s32.totalorder %s17, 2
      // Predicated region
      $region13: #{tpu_custom_call.1} parent=5 // pred_check
        %p99 = pneg %p98
      $region14: #{tpu_custom_call.1} parent=5 // pred_check_branch
        %101 = sbr.rel (%p99) target = $region16
      $region15: #{tpu_custom_call.1} parent=5 // pred_region
        // Predicated region
        $region17: #{tpu_custom_call.1} parent=15 // pred_check
          %p102 = pneg %p49
        $region18: #{tpu_custom_call.1} parent=15 // pred_check_branch
          %104 = sbr.rel (%p102) target = $region20
        $region19: #{tpu_custom_call.1} parent=15 // pred_region
          %p105 = scmp.lt.s32.totalorder %s24, 1
          %s106 = scalar_select %p105, %s24, 1
          %s107 = smul.addr %s106, 8
          %s108 = smul.addr %s107, 8
          %s109 = scalar_lea.vmem %s1, %s108
        $region20: #{tpu_custom_call.1} parent=15 // pred_fallthru
          _
      $region16: #{tpu_custom_call.1} parent=5 // pred_fallthru
        _
      %p110 = scmp.le.s32.totalorder 1, %s17
      %p111 = scmp.lt.s32.totalorder %s17, 3
      %p112 = pnand %p110, %p111
      %p113 = pneg %p112
      // Predicated region
      $region21: #{tpu_custom_call.1} parent=5 // pred_check
        _
      $region22: #{tpu_custom_call.1} parent=5 // pred_check_branch
        %115 = sbr.rel (%p112) target = $region24
      $region23: #{tpu_custom_call.1} parent=5 // pred_region
        %s116 = ssub.s32 %s17, 1
        %p117 = scmp.lt.s32.totalorder %s26, 1
        %s118 = scalar_select %p117, %s26, 1
        %s119 = smul.addr %s118, 8
        %s120 = smul.addr %s119, 8
        %s121 = scalar_lea.vmem %s1, %s120
        %p122 = pneg %p55
        %p123 = pneg %p52
        %p124 = pneg %p83
        %p125 = pneg %p80
        %s126 = sand.u32 %s70, 1
        %s127 = scalar_lea.sflag [#allocation5], %s126
        %s128 = sand.u32 %s70, 1
        %s129 = smul.addr %s128, 64
        %s130 = scalar_lea.vmem [#allocation4], %s129
        %p131 = scmp.lt.s32.totalorder %s26, 1
        %s132 = scalar_select %p131, %s26, 1
        %s133 = smul.addr %s132, 8
        %s134 = smul.addr %s133, 8
        %s135 = scalar_lea.vmem %s1, %s134
        %s136 = smul.u32 8, %s27
        %s137 = smul.u32 %s27, 8
        %s138 = sld [smem:[#allocation3 + %s137]]
        %s139 = scalar_lea.vmem %s135, %s138
        %v140 = vld [vmem:[%s139] sm:$0x1]
        %vm141 = vcmask 253952
        %142 = vst.msk [vmem:[%s130] sm:$0x1] %vm141, %v140
        %s143 = sadd.s32 %s138, 16
        %s144 = scalar_lea.vmem %s135, %s143
        %v145 = vld [vmem:[%s144] sm:$0x1]
        %146 = vst.msk [vmem:[%s130 + $0x1] sm:$0x1] %vm141, %v145
        %s147 = sadd.s32 %s138, 4
        %s148 = scalar_lea.vmem %s135, %s147
        %v149 = vld [vmem:[%s148] sm:$0x1]
        %150 = vst.msk [vmem:[%s130 + $0x2] sm:$0x1] %vm141, %v149
        %s151 = sadd.s32 %s138, 20
        %s152 = scalar_lea.vmem %s135, %s151
        %v153 = vld [vmem:[%s152] sm:$0x1]
        %154 = vst.msk [vmem:[%s130 + $0x3] sm:$0x1] %vm141, %v153
        %s155 = sadd.s32 %s138, 1
        %s156 = scalar_lea.vmem %s135, %s155
        %v157 = vld [vmem:[%s156] sm:$0x1]
        %158 = vst.msk [vmem:[%s130 + $0x4] sm:$0x1] %vm141, %v157
        %s159 = sadd.s32 %s138, 17
        %s160 = scalar_lea.vmem %s135, %s159
        %v161 = vld [vmem:[%s160] sm:$0x1]
        %162 = vst.msk [vmem:[%s130 + $0x5] sm:$0x1] %vm141, %v161
        %s163 = sadd.s32 %s138, 5
        %s164 = scalar_lea.vmem %s135, %s163
        %v165 = vld [vmem:[%s164] sm:$0x1]
        %166 = vst.msk [vmem:[%s130 + $0x6] sm:$0x1] %vm141, %v165
        %s167 = sadd.s32 %s138, 21
        %s168 = scalar_lea.vmem %s135, %s167
        %v169 = vld [vmem:[%s168] sm:$0x1]
        %170 = vst.msk [vmem:[%s130 + $0x7] sm:$0x1] %vm141, %v169
        %s171 = sadd.s32 %s137, 1
        %s172 = sld [smem:[#allocation3 + %s171]]
        %s173 = scalar_lea.vmem %s135, %s172
        %v174 = vld [vmem:[%s173] sm:$0x1]
        %s175 = scalar_lea.vmem %s130, 8 [#allocation4]
        %176 = vst.msk [vmem:[%s175] sm:$0x1] %vm141, %v174
        %s177 = sadd.s32 %s172, 16
        %s178 = scalar_lea.vmem %s135, %s177
        %v179 = vld [vmem:[%s178] sm:$0x1]
        %180 = vst.msk [vmem:[%s175 + $0x1] sm:$0x1] %vm141, %v179
        %s181 = sadd.s32 %s172, 4
        %s182 = scalar_lea.vmem %s135, %s181
        %v183 = vld [vmem:[%s182] sm:$0x1]
        %184 = vst.msk [vmem:[%s175 + $0x2] sm:$0x1] %vm141, %v183
        %s185 = sadd.s32 %s172, 20
        %s186 = scalar_lea.vmem %s135, %s185
        %v187 = vld [vmem:[%s186] sm:$0x1]
        %188 = vst.msk [vmem:[%s175 + $0x3] sm:$0x1] %vm141, %v187
        %s189 = sadd.s32 %s172, 1
        %s190 = scalar_lea.vmem %s135, %s189
        %v191 = vld [vmem:[%s190] sm:$0x1]
        %192 = vst.msk [vmem:[%s175 + $0x4] sm:$0x1] %vm141, %v191
        %s193 = sadd.s32 %s172, 17
        %s194 = scalar_lea.vmem %s135, %s193
        %v195 = vld [vmem:[%s194] sm:$0x1]
        %196 = vst.msk [vmem:[%s175 + $0x5] sm:$0x1] %vm141, %v195
        %s197 = sadd.s32 %s172, 5
        %s198 = scalar_lea.vmem %s135, %s197
        %v199 = vld [vmem:[%s198] sm:$0x1]
        %200 = vst.msk [vmem:[%s175 + $0x6] sm:$0x1] %vm141, %v199
        %s201 = sadd.s32 %s172, 21
        %s202 = scalar_lea.vmem %s135, %s201
        %v203 = vld [vmem:[%s202] sm:$0x1]
        %204 = vst.msk [vmem:[%s175 + $0x7] sm:$0x1] %vm141, %v203
        %s205 = sadd.s32 %s137, 2
        %s206 = sld [smem:[#allocation3 + %s205]]
        %s207 = scalar_lea.vmem %s135, %s206
        %v208 = vld [vmem:[%s207] sm:$0x1]
        %s209 = scalar_lea.vmem %s130, 16 [#allocation4]
        %210 = vst.msk [vmem:[%s209] sm:$0x1] %vm141, %v208
        %s211 = sadd.s32 %s206, 16
        %s212 = scalar_lea.vmem %s135, %s211
        %v213 = vld [vmem:[%s212] sm:$0x1]
        %214 = vst.msk [vmem:[%s209 + $0x1] sm:$0x1] %vm141, %v213
        %s215 = sadd.s32 %s206, 4
        %s216 = scalar_lea.vmem %s135, %s215
        %v217 = vld [vmem:[%s216] sm:$0x1]
        %218 = vst.msk [vmem:[%s209 + $0x2] sm:$0x1] %vm141, %v217
        %s219 = sadd.s32 %s206, 20
        %s220 = scalar_lea.vmem %s135, %s219
        %v221 = vld [vmem:[%s220] sm:$0x1]
        %222 = vst.msk [vmem:[%s209 + $0x3] sm:$0x1] %vm141, %v221
        %s223 = sadd.s32 %s206, 1
        %s224 = scalar_lea.vmem %s135, %s223
        %v225 = vld [vmem:[%s224] sm:$0x1]
        %226 = vst.msk [vmem:[%s209 + $0x4] sm:$0x1] %vm141, %v225
        %s227 = sadd.s32 %s206, 17
        %s228 = scalar_lea.vmem %s135, %s227
        %v229 = vld [vmem:[%s228] sm:$0x1]
        %230 = vst.msk [vmem:[%s209 + $0x5] sm:$0x1] %vm141, %v229
        %s231 = sadd.s32 %s206, 5
        %s232 = scalar_lea.vmem %s135, %s231
        %v233 = vld [vmem:[%s232] sm:$0x1]
        %234 = vst.msk [vmem:[%s209 + $0x6] sm:$0x1] %vm141, %v233
        %s235 = sadd.s32 %s206, 21
        %s236 = scalar_lea.vmem %s135, %s235
        %v237 = vld [vmem:[%s236] sm:$0x1]
        %238 = vst.msk [vmem:[%s209 + $0x7] sm:$0x1] %vm141, %v237
        %s239 = sadd.s32 %s137, 3
        %s240 = sld [smem:[#allocation3 + %s239]]
        %s241 = scalar_lea.vmem %s135, %s240
        %v242 = vld [vmem:[%s241] sm:$0x1]
        %s243 = scalar_lea.vmem %s130, 24 [#allocation4]
        %244 = vst.msk [vmem:[%s243] sm:$0x1] %vm141, %v242
        %s245 = sadd.s32 %s240, 16
        %s246 = scalar_lea.vmem %s135, %s245
        %v247 = vld [vmem:[%s246] sm:$0x1]
        %248 = vst.msk [vmem:[%s243 + $0x1] sm:$0x1] %vm141, %v247
        %s249 = sadd.s32 %s240, 4
        %s250 = scalar_lea.vmem %s135, %s249
        %v251 = vld [vmem:[%s250] sm:$0x1]
        %252 = vst.msk [vmem:[%s243 + $0x2] sm:$0x1] %vm141, %v251
        %s253 = sadd.s32 %s240, 20
        %s254 = scalar_lea.vmem %s135, %s253
        %v255 = vld [vmem:[%s254] sm:$0x1]
        %256 = vst.msk [vmem:[%s243 + $0x3] sm:$0x1] %vm141, %v255
        %s257 = sadd.s32 %s240, 1
        %s258 = scalar_lea.vmem %s135, %s257
        %v259 = vld [vmem:[%s258] sm:$0x1]
        %260 = vst.msk [vmem:[%s243 + $0x4] sm:$0x1] %vm141, %v259
        %s261 = sadd.s32 %s240, 17
        %s262 = scalar_lea.vmem %s135, %s261
        %v263 = vld [vmem:[%s262] sm:$0x1]
        %264 = vst.msk [vmem:[%s243 + $0x5] sm:$0x1] %vm141, %v263
        %s265 = sadd.s32 %s240, 5
        %s266 = scalar_lea.vmem %s135, %s265
        %v267 = vld [vmem:[%s266] sm:$0x1]
        %268 = vst.msk [vmem:[%s243 + $0x6] sm:$0x1] %vm141, %v267
        %s269 = sadd.s32 %s240, 21
        %s270 = scalar_lea.vmem %s135, %s269
        %v271 = vld [vmem:[%s270] sm:$0x1]
        %272 = vst.msk [vmem:[%s243 + $0x7] sm:$0x1] %vm141, %v271
        %s273 = sadd.s32 %s137, 4
        %s274 = sld [smem:[#allocation3 + %s273]]
        %s275 = scalar_lea.vmem %s135, %s274
        %v276 = vld [vmem:[%s275] sm:$0x1]
        %s277 = scalar_lea.vmem %s130, 32 [#allocation4]
        %278 = vst.msk [vmem:[%s277] sm:$0x1] %vm141, %v276
        %s279 = sadd.s32 %s274, 16
        %s280 = scalar_lea.vmem %s135, %s279
        %v281 = vld [vmem:[%s280] sm:$0x1]
        %282 = vst.msk [vmem:[%s277 + $0x1] sm:$0x1] %vm141, %v281
        %s283 = sadd.s32 %s274, 4
        %s284 = scalar_lea.vmem %s135, %s283
        %v285 = vld [vmem:[%s284] sm:$0x1]
        %286 = vst.msk [vmem:[%s277 + $0x2] sm:$0x1] %vm141, %v285
        %s287 = sadd.s32 %s274, 20
        %s288 = scalar_lea.vmem %s135, %s287
        %v289 = vld [vmem:[%s288] sm:$0x1]
        %290 = vst.msk [vmem:[%s277 + $0x3] sm:$0x1] %vm141, %v289
        %s291 = sadd.s32 %s274, 1
        %s292 = scalar_lea.vmem %s135, %s291
        %v293 = vld [vmem:[%s292] sm:$0x1]
        %294 = vst.msk [vmem:[%s277 + $0x4] sm:$0x1] %vm141, %v293
        %s295 = sadd.s32 %s274, 17
        %s296 = scalar_lea.vmem %s135, %s295
        %v297 = vld [vmem:[%s296] sm:$0x1]
        %298 = vst.msk [vmem:[%s277 + $0x5] sm:$0x1] %vm141, %v297
        %s299 = sadd.s32 %s274, 5
        %s300 = scalar_lea.vmem %s135, %s299
        %v301 = vld [vmem:[%s300] sm:$0x1]
        %302 = vst.msk [vmem:[%s277 + $0x6] sm:$0x1] %vm141, %v301
        %s303 = sadd.s32 %s274, 21
        %s304 = scalar_lea.vmem %s135, %s303
        %v305 = vld [vmem:[%s304] sm:$0x1]
        %306 = vst.msk [vmem:[%s277 + $0x7] sm:$0x1] %vm141, %v305
        %s307 = sadd.s32 %s137, 5
        %s308 = sld [smem:[#allocation3 + %s307]]
        %s309 = scalar_lea.vmem %s135, %s308
        %v310 = vld [vmem:[%s309] sm:$0x1]
        %s311 = scalar_lea.vmem %s130, 40 [#allocation4]
        %312 = vst.msk [vmem:[%s311] sm:$0x1] %vm141, %v310
        %s313 = sadd.s32 %s308, 16
        %s314 = scalar_lea.vmem %s135, %s313
        %v315 = vld [vmem:[%s314] sm:$0x1]
        %316 = vst.msk [vmem:[%s311 + $0x1] sm:$0x1] %vm141, %v315
        %s317 = sadd.s32 %s308, 4
        %s318 = scalar_lea.vmem %s135, %s317
        %v319 = vld [vmem:[%s318] sm:$0x1]
        %320 = vst.msk [vmem:[%s311 + $0x2] sm:$0x1] %vm141, %v319
        %s321 = sadd.s32 %s308, 20
        %s322 = scalar_lea.vmem %s135, %s321
        %v323 = vld [vmem:[%s322] sm:$0x1]
        %324 = vst.msk [vmem:[%s311 + $0x3] sm:$0x1] %vm141, %v323
        %s325 = sadd.s32 %s308, 1
        %s326 = scalar_lea.vmem %s135, %s325
        %v327 = vld [vmem:[%s326] sm:$0x1]
        %328 = vst.msk [vmem:[%s311 + $0x4] sm:$0x1] %vm141, %v327
        %s329 = sadd.s32 %s308, 17
        %s330 = scalar_lea.vmem %s135, %s329
        %v331 = vld [vmem:[%s330] sm:$0x1]
        %332 = vst.msk [vmem:[%s311 + $0x5] sm:$0x1] %vm141, %v331
        %s333 = sadd.s32 %s308, 5
        %s334 = scalar_lea.vmem %s135, %s333
        %v335 = vld [vmem:[%s334] sm:$0x1]
        %336 = vst.msk [vmem:[%s311 + $0x6] sm:$0x1] %vm141, %v335
        %s337 = sadd.s32 %s308, 21
        %s338 = scalar_lea.vmem %s135, %s337
        %v339 = vld [vmem:[%s338] sm:$0x1]
        %340 = vst.msk [vmem:[%s311 + $0x7] sm:$0x1] %vm141, %v339
        %s341 = sadd.s32 %s137, 6
        %s342 = sld [smem:[#allocation3 + %s341]]
        %s343 = scalar_lea.vmem %s135, %s342
        %v344 = vld [vmem:[%s343] sm:$0x1]
        %s345 = scalar_lea.vmem %s130, 48 [#allocation4]
        %346 = vst.msk [vmem:[%s345] sm:$0x1] %vm141, %v344
        %s347 = sadd.s32 %s342, 16
        %s348 = scalar_lea.vmem %s135, %s347
        %v349 = vld [vmem:[%s348] sm:$0x1]
        %350 = vst.msk [vmem:[%s345 + $0x1] sm:$0x1] %vm141, %v349
        %s351 = sadd.s32 %s342, 4
        %s352 = scalar_lea.vmem %s135, %s351
        %v353 = vld [vmem:[%s352] sm:$0x1]
        %354 = vst.msk [vmem:[%s345 + $0x2] sm:$0x1] %vm141, %v353
        %s355 = sadd.s32 %s342, 20
        %s356 = scalar_lea.vmem %s135, %s355
        %v357 = vld [vmem:[%s356] sm:$0x1]
        %358 = vst.msk [vmem:[%s345 + $0x3] sm:$0x1] %vm141, %v357
        %s359 = sadd.s32 %s342, 1
        %s360 = scalar_lea.vmem %s135, %s359
        %v361 = vld [vmem:[%s360] sm:$0x1]
        %362 = vst.msk [vmem:[%s345 + $0x4] sm:$0x1] %vm141, %v361
        %s363 = sadd.s32 %s342, 17
        %s364 = scalar_lea.vmem %s135, %s363
        %v365 = vld [vmem:[%s364] sm:$0x1]
        %366 = vst.msk [vmem:[%s345 + $0x5] sm:$0x1] %vm141, %v365
        %s367 = sadd.s32 %s342, 5
        %s368 = scalar_lea.vmem %s135, %s367
        %v369 = vld [vmem:[%s368] sm:$0x1]
        %370 = vst.msk [vmem:[%s345 + $0x6] sm:$0x1] %vm141, %v369
        %s371 = sadd.s32 %s342, 21
        %s372 = scalar_lea.vmem %s135, %s371
        %v373 = vld [vmem:[%s372] sm:$0x1]
        %374 = vst.msk [vmem:[%s345 + $0x7] sm:$0x1] %vm141, %v373
        %s375 = sadd.s32 %s137, 7
        %s376 = sld [smem:[#allocation3 + %s375]]
        %s377 = scalar_lea.vmem %s135, %s376
        %v378 = vld [vmem:[%s377] sm:$0x1]
        %s379 = scalar_lea.vmem %s130, 56 [#allocation4]
        %380 = vst.msk [vmem:[%s379] sm:$0x1] %vm141, %v378
        %s381 = sadd.s32 %s376, 16
        %s382 = scalar_lea.vmem %s135, %s381
        %v383 = vld [vmem:[%s382] sm:$0x1]
        %384 = vst.msk [vmem:[%s379 + $0x1] sm:$0x1] %vm141, %v383
        %s385 = sadd.s32 %s376, 4
        %s386 = scalar_lea.vmem %s135, %s385
        %v387 = vld [vmem:[%s386] sm:$0x1]
        %388 = vst.msk [vmem:[%s379 + $0x2] sm:$0x1] %vm141, %v387
        %s389 = sadd.s32 %s376, 20
        %s390 = scalar_lea.vmem %s135, %s389
        %v391 = vld [vmem:[%s390] sm:$0x1]
        %392 = vst.msk [vmem:[%s379 + $0x3] sm:$0x1] %vm141, %v391
        %s393 = sadd.s32 %s376, 1
        %s394 = scalar_lea.vmem %s135, %s393
        %v395 = vld [vmem:[%s394] sm:$0x1]
        %396 = vst.msk [vmem:[%s379 + $0x4] sm:$0x1] %vm141, %v395
        %s397 = sadd.s32 %s376, 17
        %s398 = scalar_lea.vmem %s135, %s397
        %v399 = vld [vmem:[%s398] sm:$0x1]
        %400 = vst.msk [vmem:[%s379 + $0x5] sm:$0x1] %vm141, %v399
        %s401 = sadd.s32 %s376, 5
        %s402 = scalar_lea.vmem %s135, %s401
        %v403 = vld [vmem:[%s402] sm:$0x1]
        %404 = vst.msk [vmem:[%s379 + $0x6] sm:$0x1] %vm141, %v403
        %s405 = sadd.s32 %s376, 21
        %s406 = scalar_lea.vmem %s135, %s405
        %v407 = vld [vmem:[%s406] sm:$0x1]
        %408 = vst.msk [vmem:[%s379 + $0x7] sm:$0x1] %vm141, %v407
        %s409 = sand.u32 %s70, 1
        %s410 = scalar_lea.sflag [#allocation5], %s409
        %s411 = sand.u32 %s70, 1
        %s412 = smul.addr %s411, 64
        %s413 = scalar_lea.vmem [#allocation4], %s412
        // Predicated region
        $region25: #{tpu_custom_call.1} parent=23 // pred_check
          %p414 = pneg %p80
        $region26: #{tpu_custom_call.1} parent=23 // pred_check_branch
          %416 = sbr.rel (%p414) target = $region28
        $region27: #{tpu_custom_call.1} parent=23 // pred_region
          %s417 = smul.u32 8, %s27
          %s419 = ssub.s32 1024, 1024
          %420 = vsyncadd %s410, %s419
          %s421 = smul.addr %s26, 8
          %s422 = sadd.s32 %s417, %s421
          %s423 = smul.addr %s422, 128
          %s424 = scalar_lea.hbm %s2, %s423
          %s425 = sshll.u32 %s413, 4
          %s426 = int_to_ptr.vmem [resolvable:$true] %s425
          %431 = dma.vmem_to_hbm [thread:$0]  %s426, 1024, %s424, %s410, 128, 128, 8
        $region28: #{tpu_custom_call.1} parent=23 // pred_fallthru
          _
      $region24: #{tpu_custom_call.1} parent=5 // pred_fallthru
        _
      %p432 = scmp.le.s32.totalorder 2, %s17
      // Predicated region
      $region29: #{tpu_custom_call.1} parent=5 // pred_check
        %p433 = pneg %p432
      $region30: #{tpu_custom_call.1} parent=5 // pred_check_branch
        %435 = sbr.rel (%p433) target = $region32
      $region31: #{tpu_custom_call.1} parent=5 // pred_region
        %s436 = ssub.s32 %s17, 2
        // Predicated region
        $region33: #{tpu_custom_call.1} parent=31 // pred_check
          %p437 = pneg %p86
        $region34: #{tpu_custom_call.1} parent=31 // pred_check_branch
          %439 = sbr.rel (%p437) target = $region36
        $region35: #{tpu_custom_call.1} parent=31 // pred_region
          %s440 = sand.u32 %s71, 1
          %s441 = scalar_lea.sflag [#allocation5], %s440
          %s442 = sand.u32 %s71, 1
          %s443 = smul.addr %s442, 64
          %s444 = scalar_lea.vmem [#allocation4], %s443
          %445 = dma.done %s441, 1024
        $region36: #{tpu_custom_call.1} parent=31 // pred_fallthru
          _
      $region32: #{tpu_custom_call.1} parent=5 // pred_fallthru
        _
    $region6: #{tpu_custom_call.1} parent=1 // loop_footer
      %s21 = sadd.s32 1, %s17
    $region7: #{tpu_custom_call.1} parent=1 // loop_footer_branch
      %16 = sbr.rel target = $region3
    $region8: #{tpu_custom_call.1} parent=1 // loop_exit
      _
    %446 = vsyncpa [#allocation5], 1
    %s447 = scalar_lea.sflag [#allocation5], 1
    %448 = vsyncpa %s447, 1

</llo_original>
